<compile_context>
chip_gen: v7x
topology: tpu7x:2x2x1
jax: 0.10.0
libtpu: 0.0.40
codegen_flags: <defaults>
</compile_context>

<pallas_src>
import jax
import jax.numpy as jnp
from jax.experimental import pallas as pl
from jax.experimental.pallas import tpu as pltpu


def _make_fused_kernel(Cin, H0, W0, H1, W1, Ho, Wo):
    Wp = Wo + 2           # padded image width (same for both convs here)
    Lrow = Ho * Wp        # length of one shifted-image slab == matmul N dim

    def kernel(x0_ref, x1_ref, w_ref, b_ref, o_ref, xf0, xf1, pt):
        # 1) zero-padded, flattened images in VMEM (padding folded into kernel)
        xf0[...] = jnp.zeros_like(xf0)
        xf1[...] = jnp.zeros_like(xf1)
        for h in range(H0):          # conv0: pad = 3
            xf0[:, pl.ds((h + 3) * Wp + 3, W0)] = x0_ref[0, :, pl.ds(h * W0, W0)]
        for h in range(H1):          # conv1: pad = 1
            xf1[:, pl.ds((h + 1) * Wp + 1, W1)] = x1_ref[0, :, pl.ds(h * W1, W1)]

        # 2) joint im2col patch matrix (2*9*Cin, Ho*Wp): every conv tap is a
        #    pure lane-shifted copy of the flat padded image -> no reshapes.
        for inp, xf in enumerate((xf0, xf1)):
            for kh in range(3):
                for kw in range(3):
                    r = (inp * 9 + kh * 3 + kw) * Cin
                    pt[r:r + Cin, :] = xf[:, pl.ds(kh * Wp + kw, Lrow)]

        # 3) a single MXU matmul fuses conv0, conv1 and the subtraction
        acc = jnp.dot(w_ref[...], pt[...], preferred_element_type=jnp.float32)
        res = jax.nn.sigmoid(acc + b_ref[...])            # (Cout, Ho*Wp)

        # 4) drop the Wp-stride garbage columns -> lane-dense (Cout, Ho*Wo)
        for ho in range(Ho):
            o_ref[0, :, pl.ds(ho * Wo, Wo)] = res[:, ho * Wp:ho * Wp + Wo]

    return kernel


@jax.jit
def model_forward(x0_nchw, x1_nchw, w0_oihw, b0, w1_oihw, b1):
    N, Cin, H0, W0 = x0_nchw.shape
    N1, Cin1, H1, W1 = x1_nchw.shape
    assert (N1, Cin1) == (N, Cin)
    Ho, Wo = H0 + 2 * 3 - 3 + 1, W0 + 2 * 3 - 3 + 1          # conv0 output
    assert (H1 + 2 * 1 - 3 + 1, W1 + 2 * 1 - 3 + 1) == (Ho, Wo), \
        "x1 spatial must equal x0 spatial + 4 for the subtraction to be valid"
    Cout = w0_oihw.shape[0]
    K = 2 * 9 * Cin
    Wp = Wo + 2
    LF = (Ho + 3) * Wp       # flat padded image + one slack row (tap overrun)

    # Fused weight/bias prep (tiny, one-off): Wcat columns ordered (kh, kw, ci)
    w0m = jnp.transpose(w0_oihw, (0, 2, 3, 1)).reshape(Cout, 9 * Cin)
    w1m = jnp.transpose(w1_oihw, (0, 2, 3, 1)).reshape(Cout, 9 * Cin)
    wcat = jnp.concatenate([w0m, -w1m], axis=1)              # (Cout, K)
    bdiff = (b0 - b1).reshape(Cout, 1)

    # Free reshapes (no data movement): flatten spatial onto the lane axis.
    x0f = x0_nchw.reshape(N, Cin, H0 * W0)
    x1f = x1_nchw.reshape(N, Cin, H1 * W1)

    kernel = _make_fused_kernel(Cin, H0, W0, H1, W1, Ho, Wo)

    out_flat = pl.pallas_call(
        kernel,
        out_shape=jax.ShapeDtypeStruct((N, Cout, Ho * Wo), jnp.float32),
        grid=(N,),
        in_specs=[
            pl.BlockSpec((1, Cin, H0 * W0), lambda n: (n, 0, 0)),
            pl.BlockSpec((1, Cin, H1 * W1), lambda n: (n, 0, 0)),
            pl.BlockSpec((Cout, K), lambda n: (0, 0)),
            pl.BlockSpec((Cout, 1), lambda n: (0, 0)),
        ],
        out_specs=pl.BlockSpec((1, Cout, Ho * Wo), lambda n: (n, 0, 0)),
        scratch_shapes=[
            pltpu.VMEM((Cin, LF), jnp.float32),      # flat zero-padded x0
            pltpu.VMEM((Cin, LF), jnp.float32),      # flat zero-padded x1
            pltpu.VMEM((K, Ho * Wp), jnp.float32),   # joint im2col patches
        ],
        compiler_params=pltpu.CompilerParams(
            dimension_semantics=("parallel",)),
        cost_estimate=pl.CostEstimate(
            flops=2 * N * Cout * K * Ho * Wp,
            transcendentals=N * Cout * Ho * Wp,
            bytes_accessed=4 * (N * Cin * (H0 * W0 + H1 * W1)
                                + Cout * (K + 1) + N * Cout * Ho * Wo)),
    )(x0f, x1f, wcat, bdiff)

    # NCHW result via a free reshape (no transpose needed).
    return out_flat.reshape(N, Cout, Ho, Wo)


def _reference(x0_nchw, x1_nchw, w0_oihw, b0, w1_oihw, b1):
    dn = jax.lax.conv_dimension_numbers(x0_nchw.shape, w0_oihw.shape,
                                        ("NCHW", "OIHW", "NCHW"))
    v0 = jax.lax.conv_general_dilated(x0_nchw, w0_oihw, (1, 1),
                                      [(3, 3), (3, 3)], dimension_numbers=dn)
    v0 = v0 + b0[None, :, None, None]
    v2 = jax.lax.conv_general_dilated(x1_nchw, w1_oihw, (1, 1),
                                      [(1, 1), (1, 1)], dimension_numbers=dn)
    v2 = v2 + b1[None, :, None, None]
    return jax.nn.sigmoid(v0 - v2)


if __name__ == "__main__":
    key = jax.random.PRNGKey(0)
    k0, k1, kw0, kb0, kw1, kb1 = jax.random.split(key, 6)

    # small shapes consistent with the module (x1 spatial = x0 spatial + 4)
    N, Cin, Cout = 2, 3, 8
    x0 = jax.random.normal(k0, (N, Cin, 12, 12), jnp.float32)   # NCHW
    x1 = jax.random.normal(k1, (N, Cin, 16, 16), jnp.float32)   # NCHW

    # deterministic synthetic conv parameters (OIHW weights, per-channel bias)
    fan_in = Cin * 3 * 3
    bound = 1.0 / (fan_in ** 0.5)
    w0 = jax.random.uniform(kw0, (Cout, Cin, 3, 3), jnp.float32, -bound, bound)
    b0 = jax.random.uniform(kb0, (Cout,), jnp.float32, -bound, bound)
    w1 = jax.random.uniform(kw1, (Cout, Cin, 3, 3), jnp.float32, -bound, bound)
    b1 = jax.random.uniform(kb1, (Cout,), jnp.float32, -bound, bound)

    out = model_forward(x0, x1, w0, b0, w1, b1)
    jax.block_until_ready(out)

    ref = _reference(x0, x1, w0, b0, w1, b1)
    assert out.shape == (N, Cout, 16, 16), out.shape
    assert jnp.allclose(out, ref, atol=2e-5, rtol=2e-5), \
        float(jnp.max(jnp.abs(out - ref)))

    print("KERNEL_OK")
</pallas_src>

<mosaic_0001>
module attributes {stable_mosaic.version = 11 : i64} {
  func.func @kernel(%arg0: i32, %arg1: memref<1x3x144xf32, #tpu.memory_space<vmem>>, %arg2: memref<1x3x256xf32, #tpu.memory_space<vmem>>, %arg3: memref<8x54xf32, #tpu.memory_space<vmem>>, %arg4: memref<8x1xf32, #tpu.memory_space<vmem>>, %arg5: memref<1x8x256xf32, #tpu.memory_space<vmem>>, %arg6: memref<3x342xf32, #tpu.memory_space<vmem>>, %arg7: memref<3x342xf32, #tpu.memory_space<vmem>>, %arg8: memref<54x288xf32, #tpu.memory_space<vmem>>) attributes {dimension_semantics = [#tpu.dimension_semantics<parallel>], iteration_bounds = array<i64: 2>, scalar_prefetch = 0 : i64, scratch_operands = 3 : i64, tpu.core_type = #tpu.core_type<tc>, window_params = [{transform_indices = @transform_0, window_bounds = array<i64: 1, 3, 144>}, {transform_indices = @transform_1, window_bounds = array<i64: 1, 3, 256>}, {pipeline_mode = #tpu.pipeline_mode<synchronous>, transform_indices = @transform_2, window_bounds = array<i64: 8, 54>}, {pipeline_mode = #tpu.pipeline_mode<synchronous>, transform_indices = @transform_3, window_bounds = array<i64: 8, 1>}, {transform_indices = @transform_4, window_bounds = array<i64: 1, 8, 256>}]} {
    %cst = arith.constant 0.000000e+00 : f32
    %0 = vector.broadcast %cst : f32 to vector<3x342xf32>
    %c0 = arith.constant 0 : index
    %c0_0 = arith.constant 0 : index
    %1 = vector.load %arg6[%c0, %c0_0] : memref<3x342xf32, #tpu.memory_space<vmem>>, vector<3x342xf32>
    tpu.vector_store %arg6[%c0, %c0_0], %0 {strides = array<i32>} : memref<3x342xf32, #tpu.memory_space<vmem>>, vector<3x342xf32>,
    %cst_1 = arith.constant 0.000000e+00 : f32
    %2 = vector.broadcast %cst_1 : f32 to vector<3x342xf32>
    %c0_2 = arith.constant 0 : index
    %c0_3 = arith.constant 0 : index
    %3 = vector.load %arg7[%c0_2, %c0_3] : memref<3x342xf32, #tpu.memory_space<vmem>>, vector<3x342xf32>
    tpu.vector_store %arg7[%c0_2, %c0_3], %2 {strides = array<i32>} : memref<3x342xf32, #tpu.memory_space<vmem>>, vector<3x342xf32>,
    %c0_4 = arith.constant 0 : index
    %c0_5 = arith.constant 0 : index
    %c0_6 = arith.constant 0 : index
    %4 = vector.load %arg1[%c0_4, %c0_5, %c0_6] : memref<1x3x144xf32, #tpu.memory_space<vmem>>, vector<1x3x12xf32>
    %5 = vector.shape_cast %4 : vector<1x3x12xf32> to vector<3x12xf32>
    %c0_7 = arith.constant 0 : index
    %c57 = arith.constant 57 : index
    %6 = vector.load %arg6[%c0_7, %c57] : memref<3x342xf32, #tpu.memory_space<vmem>>, vector<3x12xf32>
    tpu.vector_store %arg6[%c0_7, %c57], %5 {strides = array<i32>} : memref<3x342xf32, #tpu.memory_space<vmem>>, vector<3x12xf32>,
    %c0_8 = arith.constant 0 : index
    %c0_9 = arith.constant 0 : index
    %c12 = arith.constant 12 : index
    %7 = vector.load %arg1[%c0_8, %c0_9, %c12] : memref<1x3x144xf32, #tpu.memory_space<vmem>>, vector<1x3x12xf32>
    %8 = vector.shape_cast %7 : vector<1x3x12xf32> to vector<3x12xf32>
    %c0_10 = arith.constant 0 : index
    %c75 = arith.constant 75 : index
    %9 = vector.load %arg6[%c0_10, %c75] : memref<3x342xf32, #tpu.memory_space<vmem>>, vector<3x12xf32>
    tpu.vector_store %arg6[%c0_10, %c75], %8 {strides = array<i32>} : memref<3x342xf32, #tpu.memory_space<vmem>>, vector<3x12xf32>,
    %c0_11 = arith.constant 0 : index
    %c0_12 = arith.constant 0 : index
    %c24 = arith.constant 24 : index
    %10 = vector.load %arg1[%c0_11, %c0_12, %c24] : memref<1x3x144xf32, #tpu.memory_space<vmem>>, vector<1x3x12xf32>
    %11 = vector.shape_cast %10 : vector<1x3x12xf32> to vector<3x12xf32>
    %c0_13 = arith.constant 0 : index
    %c93 = arith.constant 93 : index
    %12 = vector.load %arg6[%c0_13, %c93] : memref<3x342xf32, #tpu.memory_space<vmem>>, vector<3x12xf32>
    tpu.vector_store %arg6[%c0_13, %c93], %11 {strides = array<i32>} : memref<3x342xf32, #tpu.memory_space<vmem>>, vector<3x12xf32>,
    %c0_14 = arith.constant 0 : index
    %c0_15 = arith.constant 0 : index
    %c36 = arith.constant 36 : index
    %13 = vector.load %arg1[%c0_14, %c0_15, %c36] : memref<1x3x144xf32, #tpu.memory_space<vmem>>, vector<1x3x12xf32>
    %14 = vector.shape_cast %13 : vector<1x3x12xf32> to vector<3x12xf32>
    %c0_16 = arith.constant 0 : index
    %c111 = arith.constant 111 : index
    %15 = vector.load %arg6[%c0_16, %c111] : memref<3x342xf32, #tpu.memory_space<vmem>>, vector<3x12xf32>
    tpu.vector_store %arg6[%c0_16, %c111], %14 {strides = array<i32>} : memref<3x342xf32, #tpu.memory_space<vmem>>, vector<3x12xf32>,
    %c0_17 = arith.constant 0 : index
    %c0_18 = arith.constant 0 : index
    %c48 = arith.constant 48 : index
    %16 = vector.load %arg1[%c0_17, %c0_18, %c48] : memref<1x3x144xf32, #tpu.memory_space<vmem>>, vector<1x3x12xf32>
    %17 = vector.shape_cast %16 : vector<1x3x12xf32> to vector<3x12xf32>
    %c0_19 = arith.constant 0 : index
    %c129 = arith.constant 129 : index
    %18 = vector.load %arg6[%c0_19, %c129] : memref<3x342xf32, #tpu.memory_space<vmem>>, vector<3x12xf32>
    tpu.vector_store %arg6[%c0_19, %c129], %17 {strides = array<i32>} : memref<3x342xf32, #tpu.memory_space<vmem>>, vector<3x12xf32>,
    %c0_20 = arith.constant 0 : index
    %c0_21 = arith.constant 0 : index
    %c60 = arith.constant 60 : index
    %19 = vector.load %arg1[%c0_20, %c0_21, %c60] : memref<1x3x144xf32, #tpu.memory_space<vmem>>, vector<1x3x12xf32>
    %20 = vector.shape_cast %19 : vector<1x3x12xf32> to vector<3x12xf32>
    %c0_22 = arith.constant 0 : index
    %c147 = arith.constant 147 : index
    %21 = vector.load %arg6[%c0_22, %c147] : memref<3x342xf32, #tpu.memory_space<vmem>>, vector<3x12xf32>
    tpu.vector_store %arg6[%c0_22, %c147], %20 {strides = array<i32>} : memref<3x342xf32, #tpu.memory_space<vmem>>, vector<3x12xf32>,
    %c0_23 = arith.constant 0 : index
    %c0_24 = arith.constant 0 : index
    %c72 = arith.constant 72 : index
    %22 = vector.load %arg1[%c0_23, %c0_24, %c72] : memref<1x3x144xf32, #tpu.memory_space<vmem>>, vector<1x3x12xf32>
    %23 = vector.shape_cast %22 : vector<1x3x12xf32> to vector<3x12xf32>
    %c0_25 = arith.constant 0 : index
    %c165 = arith.constant 165 : index
    %24 = vector.load %arg6[%c0_25, %c165] : memref<3x342xf32, #tpu.memory_space<vmem>>, vector<3x12xf32>
    tpu.vector_store %arg6[%c0_25, %c165], %23 {strides = array<i32>} : memref<3x342xf32, #tpu.memory_space<vmem>>, vector<3x12xf32>,
    %c0_26 = arith.constant 0 : index
    %c0_27 = arith.constant 0 : index
    %c84 = arith.constant 84 : index
    %25 = vector.load %arg1[%c0_26, %c0_27, %c84] : memref<1x3x144xf32, #tpu.memory_space<vmem>>, vector<1x3x12xf32>
    %26 = vector.shape_cast %25 : vector<1x3x12xf32> to vector<3x12xf32>
    %c0_28 = arith.constant 0 : index
    %c183 = arith.constant 183 : index
    %27 = vector.load %arg6[%c0_28, %c183] : memref<3x342xf32, #tpu.memory_space<vmem>>, vector<3x12xf32>
    tpu.vector_store %arg6[%c0_28, %c183], %26 {strides = array<i32>} : memref<3x342xf32, #tpu.memory_space<vmem>>, vector<3x12xf32>,
    %c0_29 = arith.constant 0 : index
    %c0_30 = arith.constant 0 : index
    %c96 = arith.constant 96 : index
    %28 = vector.load %arg1[%c0_29, %c0_30, %c96] : memref<1x3x144xf32, #tpu.memory_space<vmem>>, vector<1x3x12xf32>
    %29 = vector.shape_cast %28 : vector<1x3x12xf32> to vector<3x12xf32>
    %c0_31 = arith.constant 0 : index
    %c201 = arith.constant 201 : index
    %30 = vector.load %arg6[%c0_31, %c201] : memref<3x342xf32, #tpu.memory_space<vmem>>, vector<3x12xf32>
    tpu.vector_store %arg6[%c0_31, %c201], %29 {strides = array<i32>} : memref<3x342xf32, #tpu.memory_space<vmem>>, vector<3x12xf32>,
    %c0_32 = arith.constant 0 : index
    %c0_33 = arith.constant 0 : index
    %c108 = arith.constant 108 : index
    %31 = vector.load %arg1[%c0_32, %c0_33, %c108] : memref<1x3x144xf32, #tpu.memory_space<vmem>>, vector<1x3x12xf32>
    %32 = vector.shape_cast %31 : vector<1x3x12xf32> to vector<3x12xf32>
    %c0_34 = arith.constant 0 : index
    %c219 = arith.constant 219 : index
    %33 = vector.load %arg6[%c0_34, %c219] : memref<3x342xf32, #tpu.memory_space<vmem>>, vector<3x12xf32>
    tpu.vector_store %arg6[%c0_34, %c219], %32 {strides = array<i32>} : memref<3x342xf32, #tpu.memory_space<vmem>>, vector<3x12xf32>,
    %c0_35 = arith.constant 0 : index
    %c0_36 = arith.constant 0 : index
    %c120 = arith.constant 120 : index
    %34 = vector.load %arg1[%c0_35, %c0_36, %c120] : memref<1x3x144xf32, #tpu.memory_space<vmem>>, vector<1x3x12xf32>
    %35 = vector.shape_cast %34 : vector<1x3x12xf32> to vector<3x12xf32>
    %c0_37 = arith.constant 0 : index
    %c237 = arith.constant 237 : index
    %36 = vector.load %arg6[%c0_37, %c237] : memref<3x342xf32, #tpu.memory_space<vmem>>, vector<3x12xf32>
    tpu.vector_store %arg6[%c0_37, %c237], %35 {strides = array<i32>} : memref<3x342xf32, #tpu.memory_space<vmem>>, vector<3x12xf32>,
    %c0_38 = arith.constant 0 : index
    %c0_39 = arith.constant 0 : index
    %c132 = arith.constant 132 : index
    %37 = vector.load %arg1[%c0_38, %c0_39, %c132] : memref<1x3x144xf32, #tpu.memory_space<vmem>>, vector<1x3x12xf32>
    %38 = vector.shape_cast %37 : vector<1x3x12xf32> to vector<3x12xf32>
    %c0_40 = arith.constant 0 : index
    %c255 = arith.constant 255 : index
    %39 = vector.load %arg6[%c0_40, %c255] : memref<3x342xf32, #tpu.memory_space<vmem>>, vector<3x12xf32>
    tpu.vector_store %arg6[%c0_40, %c255], %38 {strides = array<i32>} : memref<3x342xf32, #tpu.memory_space<vmem>>, vector<3x12xf32>,
    %c0_41 = arith.constant 0 : index
    %c0_42 = arith.constant 0 : index
    %c0_43 = arith.constant 0 : index
    %40 = vector.load %arg2[%c0_41, %c0_42, %c0_43] : memref<1x3x256xf32, #tpu.memory_space<vmem>>, vector<1x3x16xf32>
    %41 = vector.shape_cast %40 : vector<1x3x16xf32> to vector<3x16xf32>
    %c0_44 = arith.constant 0 : index
    %c19 = arith.constant 19 : index
    %42 = vector.load %arg7[%c0_44, %c19] : memref<3x342xf32, #tpu.memory_space<vmem>>, vector<3x16xf32>
    tpu.vector_store %arg7[%c0_44, %c19], %41 {strides = array<i32>} : memref<3x342xf32, #tpu.memory_space<vmem>>, vector<3x16xf32>,
    %c0_45 = arith.constant 0 : index
    %c0_46 = arith.constant 0 : index
    %c16 = arith.constant 16 : index
    %43 = vector.load %arg2[%c0_45, %c0_46, %c16] : memref<1x3x256xf32, #tpu.memory_space<vmem>>, vector<1x3x16xf32>
    %44 = vector.shape_cast %43 : vector<1x3x16xf32> to vector<3x16xf32>
    %c0_47 = arith.constant 0 : index
    %c37 = arith.constant 37 : index
    %45 = vector.load %arg7[%c0_47, %c37] : memref<3x342xf32, #tpu.memory_space<vmem>>, vector<3x16xf32>
    tpu.vector_store %arg7[%c0_47, %c37], %44 {strides = array<i32>} : memref<3x342xf32, #tpu.memory_space<vmem>>, vector<3x16xf32>,
    %c0_48 = arith.constant 0 : index
    %c0_49 = arith.constant 0 : index
    %c32 = arith.constant 32 : index
    %46 = vector.load %arg2[%c0_48, %c0_49, %c32] : memref<1x3x256xf32, #tpu.memory_space<vmem>>, vector<1x3x16xf32>
    %47 = vector.shape_cast %46 : vector<1x3x16xf32> to vector<3x16xf32>
    %c0_50 = arith.constant 0 : index
    %c55 = arith.constant 55 : index
    %48 = vector.load %arg7[%c0_50, %c55] : memref<3x342xf32, #tpu.memory_space<vmem>>, vector<3x16xf32>
    tpu.vector_store %arg7[%c0_50, %c55], %47 {strides = array<i32>} : memref<3x342xf32, #tpu.memory_space<vmem>>, vector<3x16xf32>,
    %c0_51 = arith.constant 0 : index
    %c0_52 = arith.constant 0 : index
    %c48_53 = arith.constant 48 : index
    %49 = vector.load %arg2[%c0_51, %c0_52, %c48_53] : memref<1x3x256xf32, #tpu.memory_space<vmem>>, vector<1x3x16xf32>
    %50 = vector.shape_cast %49 : vector<1x3x16xf32> to vector<3x16xf32>
    %c0_54 = arith.constant 0 : index
    %c73 = arith.constant 73 : index
    %51 = vector.load %arg7[%c0_54, %c73] : memref<3x342xf32, #tpu.memory_space<vmem>>, vector<3x16xf32>
    tpu.vector_store %arg7[%c0_54, %c73], %50 {strides = array<i32>} : memref<3x342xf32, #tpu.memory_space<vmem>>, vector<3x16xf32>,
    %c0_55 = arith.constant 0 : index
    %c0_56 = arith.constant 0 : index
    %c64 = arith.constant 64 : index
    %52 = vector.load %arg2[%c0_55, %c0_56, %c64] : memref<1x3x256xf32, #tpu.memory_space<vmem>>, vector<1x3x16xf32>
    %53 = vector.shape_cast %52 : vector<1x3x16xf32> to vector<3x16xf32>
    %c0_57 = arith.constant 0 : index
    %c91 = arith.constant 91 : index
    %54 = vector.load %arg7[%c0_57, %c91] : memref<3x342xf32, #tpu.memory_space<vmem>>, vector<3x16xf32>
    tpu.vector_store %arg7[%c0_57, %c91], %53 {strides = array<i32>} : memref<3x342xf32, #tpu.memory_space<vmem>>, vector<3x16xf32>,
    %c0_58 = arith.constant 0 : index
    %c0_59 = arith.constant 0 : index
    %c80 = arith.constant 80 : index
    %55 = vector.load %arg2[%c0_58, %c0_59, %c80] : memref<1x3x256xf32, #tpu.memory_space<vmem>>, vector<1x3x16xf32>
    %56 = vector.shape_cast %55 : vector<1x3x16xf32> to vector<3x16xf32>
    %c0_60 = arith.constant 0 : index
    %c109 = arith.constant 109 : index
    %57 = vector.load %arg7[%c0_60, %c109] : memref<3x342xf32, #tpu.memory_space<vmem>>, vector<3x16xf32>
    tpu.vector_store %arg7[%c0_60, %c109], %56 {strides = array<i32>} : memref<3x342xf32, #tpu.memory_space<vmem>>, vector<3x16xf32>,
    %c0_61 = arith.constant 0 : index
    %c0_62 = arith.constant 0 : index
    %c96_63 = arith.constant 96 : index
    %58 = vector.load %arg2[%c0_61, %c0_62, %c96_63] : memref<1x3x256xf32, #tpu.memory_space<vmem>>, vector<1x3x16xf32>
    %59 = vector.shape_cast %58 : vector<1x3x16xf32> to vector<3x16xf32>
    %c0_64 = arith.constant 0 : index
    %c127 = arith.constant 127 : index
    %60 = vector.load %arg7[%c0_64, %c127] : memref<3x342xf32, #tpu.memory_space<vmem>>, vector<3x16xf32>
    tpu.vector_store %arg7[%c0_64, %c127], %59 {strides = array<i32>} : memref<3x342xf32, #tpu.memory_space<vmem>>, vector<3x16xf32>,
    %c0_65 = arith.constant 0 : index
    %c0_66 = arith.constant 0 : index
    %c112 = arith.constant 112 : index
    %61 = vector.load %arg2[%c0_65, %c0_66, %c112] : memref<1x3x256xf32, #tpu.memory_space<vmem>>, vector<1x3x16xf32>
    %62 = vector.shape_cast %61 : vector<1x3x16xf32> to vector<3x16xf32>
    %c0_67 = arith.constant 0 : index
    %c145 = arith.constant 145 : index
    %63 = vector.load %arg7[%c0_67, %c145] : memref<3x342xf32, #tpu.memory_space<vmem>>, vector<3x16xf32>
    tpu.vector_store %arg7[%c0_67, %c145], %62 {strides = array<i32>} : memref<3x342xf32, #tpu.memory_space<vmem>>, vector<3x16xf32>,
    %c0_68 = arith.constant 0 : index
    %c0_69 = arith.constant 0 : index
    %c128 = arith.constant 128 : index
    %64 = vector.load %arg2[%c0_68, %c0_69, %c128] : memref<1x3x256xf32, #tpu.memory_space<vmem>>, vector<1x3x16xf32>
    %65 = vector.shape_cast %64 : vector<1x3x16xf32> to vector<3x16xf32>
    %c0_70 = arith.constant 0 : index
    %c163 = arith.constant 163 : index
    %66 = vector.load %arg7[%c0_70, %c163] : memref<3x342xf32, #tpu.memory_space<vmem>>, vector<3x16xf32>
    tpu.vector_store %arg7[%c0_70, %c163], %65 {strides = array<i32>} : memref<3x342xf32, #tpu.memory_space<vmem>>, vector<3x16xf32>,
    %c0_71 = arith.constant 0 : index
    %c0_72 = arith.constant 0 : index
    %c144 = arith.constant 144 : index
    %67 = vector.load %arg2[%c0_71, %c0_72, %c144] : memref<1x3x256xf32, #tpu.memory_space<vmem>>, vector<1x3x16xf32>
    %68 = vector.shape_cast %67 : vector<1x3x16xf32> to vector<3x16xf32>
    %c0_73 = arith.constant 0 : index
    %c181 = arith.constant 181 : index
    %69 = vector.load %arg7[%c0_73, %c181] : memref<3x342xf32, #tpu.memory_space<vmem>>, vector<3x16xf32>
    tpu.vector_store %arg7[%c0_73, %c181], %68 {strides = array<i32>} : memref<3x342xf32, #tpu.memory_space<vmem>>, vector<3x16xf32>,
    %c0_74 = arith.constant 0 : index
    %c0_75 = arith.constant 0 : index
    %c160 = arith.constant 160 : index
    %70 = vector.load %arg2[%c0_74, %c0_75, %c160] : memref<1x3x256xf32, #tpu.memory_space<vmem>>, vector<1x3x16xf32>
    %71 = vector.shape_cast %70 : vector<1x3x16xf32> to vector<3x16xf32>
    %c0_76 = arith.constant 0 : index
    %c199 = arith.constant 199 : index
    %72 = vector.load %arg7[%c0_76, %c199] : memref<3x342xf32, #tpu.memory_space<vmem>>, vector<3x16xf32>
    tpu.vector_store %arg7[%c0_76, %c199], %71 {strides = array<i32>} : memref<3x342xf32, #tpu.memory_space<vmem>>, vector<3x16xf32>,
    %c0_77 = arith.constant 0 : index
    %c0_78 = arith.constant 0 : index
    %c176 = arith.constant 176 : index
    %73 = vector.load %arg2[%c0_77, %c0_78, %c176] : memref<1x3x256xf32, #tpu.memory_space<vmem>>, vector<1x3x16xf32>
    %74 = vector.shape_cast %73 : vector<1x3x16xf32> to vector<3x16xf32>
    %c0_79 = arith.constant 0 : index
    %c217 = arith.constant 217 : index
    %75 = vector.load %arg7[%c0_79, %c217] : memref<3x342xf32, #tpu.memory_space<vmem>>, vector<3x16xf32>
    tpu.vector_store %arg7[%c0_79, %c217], %74 {strides = array<i32>} : memref<3x342xf32, #tpu.memory_space<vmem>>, vector<3x16xf32>,
    %c0_80 = arith.constant 0 : index
    %c0_81 = arith.constant 0 : index
    %c192 = arith.constant 192 : index
    %76 = vector.load %arg2[%c0_80, %c0_81, %c192] : memref<1x3x256xf32, #tpu.memory_space<vmem>>, vector<1x3x16xf32>
    %77 = vector.shape_cast %76 : vector<1x3x16xf32> to vector<3x16xf32>
    %c0_82 = arith.constant 0 : index
    %c235 = arith.constant 235 : index
    %78 = vector.load %arg7[%c0_82, %c235] : memref<3x342xf32, #tpu.memory_space<vmem>>, vector<3x16xf32>
    tpu.vector_store %arg7[%c0_82, %c235], %77 {strides = array<i32>} : memref<3x342xf32, #tpu.memory_space<vmem>>, vector<3x16xf32>,
    %c0_83 = arith.constant 0 : index
    %c0_84 = arith.constant 0 : index
    %c208 = arith.constant 208 : index
    %79 = vector.load %arg2[%c0_83, %c0_84, %c208] : memref<1x3x256xf32, #tpu.memory_space<vmem>>, vector<1x3x16xf32>
    %80 = vector.shape_cast %79 : vector<1x3x16xf32> to vector<3x16xf32>
    %c0_85 = arith.constant 0 : index
    %c253 = arith.constant 253 : index
    %81 = vector.load %arg7[%c0_85, %c253] : memref<3x342xf32, #tpu.memory_space<vmem>>, vector<3x16xf32>
    tpu.vector_store %arg7[%c0_85, %c253], %80 {strides = array<i32>} : memref<3x342xf32, #tpu.memory_space<vmem>>, vector<3x16xf32>,
    %c0_86 = arith.constant 0 : index
    %c0_87 = arith.constant 0 : index
    %c224 = arith.constant 224 : index
    %82 = vector.load %arg2[%c0_86, %c0_87, %c224] : memref<1x3x256xf32, #tpu.memory_space<vmem>>, vector<1x3x16xf32>
    %83 = vector.shape_cast %82 : vector<1x3x16xf32> to vector<3x16xf32>
    %c0_88 = arith.constant 0 : index
    %c271 = arith.constant 271 : index
    %84 = vector.load %arg7[%c0_88, %c271] : memref<3x342xf32, #tpu.memory_space<vmem>>, vector<3x16xf32>
    tpu.vector_store %arg7[%c0_88, %c271], %83 {strides = array<i32>} : memref<3x342xf32, #tpu.memory_space<vmem>>, vector<3x16xf32>,
    %c0_89 = arith.constant 0 : index
    %c0_90 = arith.constant 0 : index
    %c240 = arith.constant 240 : index
    %85 = vector.load %arg2[%c0_89, %c0_90, %c240] : memref<1x3x256xf32, #tpu.memory_space<vmem>>, vector<1x3x16xf32>
    %86 = vector.shape_cast %85 : vector<1x3x16xf32> to vector<3x16xf32>
    %c0_91 = arith.constant 0 : index
    %c289 = arith.constant 289 : index
    %87 = vector.load %arg7[%c0_91, %c289] : memref<3x342xf32, #tpu.memory_space<vmem>>, vector<3x16xf32>
    tpu.vector_store %arg7[%c0_91, %c289], %86 {strides = array<i32>} : memref<3x342xf32, #tpu.memory_space<vmem>>, vector<3x16xf32>,
    %c0_92 = arith.constant 0 : index
    %c0_93 = arith.constant 0 : index
    %88 = vector.load %arg6[%c0_92, %c0_93] : memref<3x342xf32, #tpu.memory_space<vmem>>, vector<3x288xf32>
    %c0_94 = arith.constant 0 : index
    %c0_95 = arith.constant 0 : index
    %89 = vector.load %arg8[%c0_94, %c0_95] : memref<54x288xf32, #tpu.memory_space<vmem>>, vector<3x288xf32>
    tpu.vector_store %arg8[%c0_94, %c0_95], %88 {strides = array<i32>} : memref<54x288xf32, #tpu.memory_space<vmem>>, vector<3x288xf32>,
    %c0_96 = arith.constant 0 : index
    %c1 = arith.constant 1 : index
    %90 = vector.load %arg6[%c0_96, %c1] : memref<3x342xf32, #tpu.memory_space<vmem>>, vector<3x288xf32>
    %c3 = arith.constant 3 : index
    %c0_97 = arith.constant 0 : index
    %91 = vector.load %arg8[%c3, %c0_97] : memref<54x288xf32, #tpu.memory_space<vmem>>, vector<3x288xf32>
    tpu.vector_store %arg8[%c3, %c0_97], %90 {strides = array<i32>} : memref<54x288xf32, #tpu.memory_space<vmem>>, vector<3x288xf32>,
    %c0_98 = arith.constant 0 : index
    %c2 = arith.constant 2 : index
    %92 = vector.load %arg6[%c0_98, %c2] : memref<3x342xf32, #tpu.memory_space<vmem>>, vector<3x288xf32>
    %c6 = arith.constant 6 : index
    %c0_99 = arith.constant 0 : index
    %93 = vector.load %arg8[%c6, %c0_99] : memref<54x288xf32, #tpu.memory_space<vmem>>, vector<3x288xf32>
    tpu.vector_store %arg8[%c6, %c0_99], %92 {strides = array<i32>} : memref<54x288xf32, #tpu.memory_space<vmem>>, vector<3x288xf32>,
    %c0_100 = arith.constant 0 : index
    %c18 = arith.constant 18 : index
    %94 = vector.load %arg6[%c0_100, %c18] : memref<3x342xf32, #tpu.memory_space<vmem>>, vector<3x288xf32>
    %c9 = arith.constant 9 : index
    %c0_101 = arith.constant 0 : index
    %95 = vector.load %arg8[%c9, %c0_101] : memref<54x288xf32, #tpu.memory_space<vmem>>, vector<3x288xf32>
    tpu.vector_store %arg8[%c9, %c0_101], %94 {strides = array<i32>} : memref<54x288xf32, #tpu.memory_space<vmem>>, vector<3x288xf32>,
    %c0_102 = arith.constant 0 : index
    %c19_103 = arith.constant 19 : index
    %96 = vector.load %arg6[%c0_102, %c19_103] : memref<3x342xf32, #tpu.memory_space<vmem>>, vector<3x288xf32>
    %c12_104 = arith.constant 12 : index
    %c0_105 = arith.constant 0 : index
    %97 = vector.load %arg8[%c12_104, %c0_105] : memref<54x288xf32, #tpu.memory_space<vmem>>, vector<3x288xf32>
    tpu.vector_store %arg8[%c12_104, %c0_105], %96 {strides = array<i32>} : memref<54x288xf32, #tpu.memory_space<vmem>>, vector<3x288xf32>,
    %c0_106 = arith.constant 0 : index
    %c20 = arith.constant 20 : index
    %98 = vector.load %arg6[%c0_106, %c20] : memref<3x342xf32, #tpu.memory_space<vmem>>, vector<3x288xf32>
    %c15 = arith.constant 15 : index
    %c0_107 = arith.constant 0 : index
    %99 = vector.load %arg8[%c15, %c0_107] : memref<54x288xf32, #tpu.memory_space<vmem>>, vector<3x288xf32>
    tpu.vector_store %arg8[%c15, %c0_107], %98 {strides = array<i32>} : memref<54x288xf32, #tpu.memory_space<vmem>>, vector<3x288xf32>,
    %c0_108 = arith.constant 0 : index
    %c36_109 = arith.constant 36 : index
    %100 = vector.load %arg6[%c0_108, %c36_109] : memref<3x342xf32, #tpu.memory_space<vmem>>, vector<3x288xf32>
    %c18_110 = arith.constant 18 : index
    %c0_111 = arith.constant 0 : index
    %101 = vector.load %arg8[%c18_110, %c0_111] : memref<54x288xf32, #tpu.memory_space<vmem>>, vector<3x288xf32>
    tpu.vector_store %arg8[%c18_110, %c0_111], %100 {strides = array<i32>} : memref<54x288xf32, #tpu.memory_space<vmem>>, vector<3x288xf32>,
    %c0_112 = arith.constant 0 : index
    %c37_113 = arith.constant 37 : index
    %102 = vector.load %arg6[%c0_112, %c37_113] : memref<3x342xf32, #tpu.memory_space<vmem>>, vector<3x288xf32>
    %c21 = arith.constant 21 : index
    %c0_114 = arith.constant 0 : index
    %103 = vector.load %arg8[%c21, %c0_114] : memref<54x288xf32, #tpu.memory_space<vmem>>, vector<3x288xf32>
    tpu.vector_store %arg8[%c21, %c0_114], %102 {strides = array<i32>} : memref<54x288xf32, #tpu.memory_space<vmem>>, vector<3x288xf32>,
    %c0_115 = arith.constant 0 : index
    %c38 = arith.constant 38 : index
    %104 = vector.load %arg6[%c0_115, %c38] : memref<3x342xf32, #tpu.memory_space<vmem>>, vector<3x288xf32>
    %c24_116 = arith.constant 24 : index
    %c0_117 = arith.constant 0 : index
    %105 = vector.load %arg8[%c24_116, %c0_117] : memref<54x288xf32, #tpu.memory_space<vmem>>, vector<3x288xf32>
    tpu.vector_store %arg8[%c24_116, %c0_117], %104 {strides = array<i32>} : memref<54x288xf32, #tpu.memory_space<vmem>>, vector<3x288xf32>,
    %c0_118 = arith.constant 0 : index
    %c0_119 = arith.constant 0 : index
    %106 = vector.load %arg7[%c0_118, %c0_119] : memref<3x342xf32, #tpu.memory_space<vmem>>, vector<3x288xf32>
    %c27 = arith.constant 27 : index
    %c0_120 = arith.constant 0 : index
    %107 = vector.load %arg8[%c27, %c0_120] : memref<54x288xf32, #tpu.memory_space<vmem>>, vector<3x288xf32>
    tpu.vector_store %arg8[%c27, %c0_120], %106 {strides = array<i32>} : memref<54x288xf32, #tpu.memory_space<vmem>>, vector<3x288xf32>,
    %c0_121 = arith.constant 0 : index
    %c1_122 = arith.constant 1 : index
    %108 = vector.load %arg7[%c0_121, %c1_122] : memref<3x342xf32, #tpu.memory_space<vmem>>, vector<3x288xf32>
    %c30 = arith.constant 30 : index
    %c0_123 = arith.constant 0 : index
    %109 = vector.load %arg8[%c30, %c0_123] : memref<54x288xf32, #tpu.memory_space<vmem>>, vector<3x288xf32>
    tpu.vector_store %arg8[%c30, %c0_123], %108 {strides = array<i32>} : memref<54x288xf32, #tpu.memory_space<vmem>>, vector<3x288xf32>,
    %c0_124 = arith.constant 0 : index
    %c2_125 = arith.constant 2 : index
    %110 = vector.load %arg7[%c0_124, %c2_125] : memref<3x342xf32, #tpu.memory_space<vmem>>, vector<3x288xf32>
    %c33 = arith.constant 33 : index
    %c0_126 = arith.constant 0 : index
    %111 = vector.load %arg8[%c33, %c0_126] : memref<54x288xf32, #tpu.memory_space<vmem>>, vector<3x288xf32>
    tpu.vector_store %arg8[%c33, %c0_126], %110 {strides = array<i32>} : memref<54x288xf32, #tpu.memory_space<vmem>>, vector<3x288xf32>,
    %c0_127 = arith.constant 0 : index
    %c18_128 = arith.constant 18 : index
    %112 = vector.load %arg7[%c0_127, %c18_128] : memref<3x342xf32, #tpu.memory_space<vmem>>, vector<3x288xf32>
    %c36_129 = arith.constant 36 : index
    %c0_130 = arith.constant 0 : index
    %113 = vector.load %arg8[%c36_129, %c0_130] : memref<54x288xf32, #tpu.memory_space<vmem>>, vector<3x288xf32>
    tpu.vector_store %arg8[%c36_129, %c0_130], %112 {strides = array<i32>} : memref<54x288xf32, #tpu.memory_space<vmem>>, vector<3x288xf32>,
    %c0_131 = arith.constant 0 : index
    %c19_132 = arith.constant 19 : index
    %114 = vector.load %arg7[%c0_131, %c19_132] : memref<3x342xf32, #tpu.memory_space<vmem>>, vector<3x288xf32>
    %c39 = arith.constant 39 : index
    %c0_133 = arith.constant 0 : index
    %115 = vector.load %arg8[%c39, %c0_133] : memref<54x288xf32, #tpu.memory_space<vmem>>, vector<3x288xf32>
    tpu.vector_store %arg8[%c39, %c0_133], %114 {strides = array<i32>} : memref<54x288xf32, #tpu.memory_space<vmem>>, vector<3x288xf32>,
    %c0_134 = arith.constant 0 : index
    %c20_135 = arith.constant 20 : index
    %116 = vector.load %arg7[%c0_134, %c20_135] : memref<3x342xf32, #tpu.memory_space<vmem>>, vector<3x288xf32>
    %c42 = arith.constant 42 : index
    %c0_136 = arith.constant 0 : index
    %117 = vector.load %arg8[%c42, %c0_136] : memref<54x288xf32, #tpu.memory_space<vmem>>, vector<3x288xf32>
    tpu.vector_store %arg8[%c42, %c0_136], %116 {strides = array<i32>} : memref<54x288xf32, #tpu.memory_space<vmem>>, vector<3x288xf32>,
    %c0_137 = arith.constant 0 : index
    %c36_138 = arith.constant 36 : index
    %118 = vector.load %arg7[%c0_137, %c36_138] : memref<3x342xf32, #tpu.memory_space<vmem>>, vector<3x288xf32>
    %c45 = arith.constant 45 : index
    %c0_139 = arith.constant 0 : index
    %119 = vector.load %arg8[%c45, %c0_139] : memref<54x288xf32, #tpu.memory_space<vmem>>, vector<3x288xf32>
    tpu.vector_store %arg8[%c45, %c0_139], %118 {strides = array<i32>} : memref<54x288xf32, #tpu.memory_space<vmem>>, vector<3x288xf32>,
    %c0_140 = arith.constant 0 : index
    %c37_141 = arith.constant 37 : index
    %120 = vector.load %arg7[%c0_140, %c37_141] : memref<3x342xf32, #tpu.memory_space<vmem>>, vector<3x288xf32>
    %c48_142 = arith.constant 48 : index
    %c0_143 = arith.constant 0 : index
    %121 = vector.load %arg8[%c48_142, %c0_143] : memref<54x288xf32, #tpu.memory_space<vmem>>, vector<3x288xf32>
    tpu.vector_store %arg8[%c48_142, %c0_143], %120 {strides = array<i32>} : memref<54x288xf32, #tpu.memory_space<vmem>>, vector<3x288xf32>,
    %c0_144 = arith.constant 0 : index
    %c38_145 = arith.constant 38 : index
    %122 = vector.load %arg7[%c0_144, %c38_145] : memref<3x342xf32, #tpu.memory_space<vmem>>, vector<3x288xf32>
    %c51 = arith.constant 51 : index
    %c0_146 = arith.constant 0 : index
    %123 = vector.load %arg8[%c51, %c0_146] : memref<54x288xf32, #tpu.memory_space<vmem>>, vector<3x288xf32>
    tpu.vector_store %arg8[%c51, %c0_146], %122 {strides = array<i32>} : memref<54x288xf32, #tpu.memory_space<vmem>>, vector<3x288xf32>,
    %c0_147 = arith.constant 0 : index
    %c0_148 = arith.constant 0 : index
    %124 = vector.load %arg3[%c0_147, %c0_148] : memref<8x54xf32, #tpu.memory_space<vmem>>, vector<8x54xf32>
    %c0_149 = arith.constant 0 : index
    %c0_150 = arith.constant 0 : index
    %125 = vector.load %arg8[%c0_149, %c0_150] : memref<54x288xf32, #tpu.memory_space<vmem>>, vector<54x288xf32>
    %cst_151 = arith.constant dense<0.000000e+00> : vector<8x288xf32>
    %126 = tpu.matmul %124, %125, %cst_151 {dimension_numbers = #tpu.dot_dimension_numbers<[1], [0], [0], [1], [0, 0, 1, 1], [], []>} : vector<8x54xf32>, vector<54x288xf32>, vector<8x288xf32> -> vector<8x288xf32>
    %c0_152 = arith.constant 0 : index
    %c0_153 = arith.constant 0 : index
    %127 = vector.load %arg4[%c0_152, %c0_153] : memref<8x1xf32, #tpu.memory_space<vmem>>, vector<8x1xf32>
    %128 = vector.broadcast %127 : vector<8x1xf32> to vector<8x288xf32>
    %129 = arith.addf %126, %128 : vector<8x288xf32>
    %130 = arith.negf %129 : vector<8x288xf32>
    %131 = math.exp %130 : vector<8x288xf32>
    %cst_154 = arith.constant 1.000000e+00 : f32
    %132 = vector.broadcast %cst_154 : f32 to vector<8x288xf32>
    %133 = arith.addf %132, %131 : vector<8x288xf32>
    %134 = arith.divf %132, %133 : vector<8x288xf32>
    %135 = vector.extract_strided_slice %134 {offsets = [0, 0], sizes = [8, 16], strides = [1, 1]} : vector<8x288xf32> to vector<8x16xf32>
    %c0_155 = arith.constant 0 : index
    %c0_156 = arith.constant 0 : index
    %c0_157 = arith.constant 0 : index
    %136 = vector.load %arg5[%c0_155, %c0_156, %c0_157] : memref<1x8x256xf32, #tpu.memory_space<vmem>>, vector<1x8x16xf32>
    %137 = vector.shape_cast %136 : vector<1x8x16xf32> to vector<8x16xf32>
    %138 = vector.shape_cast %135 : vector<8x16xf32> to vector<1x8x16xf32>
    tpu.vector_store %arg5[%c0_155, %c0_156, %c0_157], %138 {strides = array<i32>} : memref<1x8x256xf32, #tpu.memory_space<vmem>>, vector<1x8x16xf32>,
    %139 = vector.extract_strided_slice %134 {offsets = [0, 18], sizes = [8, 16], strides = [1, 1]} : vector<8x288xf32> to vector<8x16xf32>
    %c0_158 = arith.constant 0 : index
    %c0_159 = arith.constant 0 : index
    %c16_160 = arith.constant 16 : index
    %140 = vector.load %arg5[%c0_158, %c0_159, %c16_160] : memref<1x8x256xf32, #tpu.memory_space<vmem>>, vector<1x8x16xf32>
    %141 = vector.shape_cast %140 : vector<1x8x16xf32> to vector<8x16xf32>
    %142 = vector.shape_cast %139 : vector<8x16xf32> to vector<1x8x16xf32>
    tpu.vector_store %arg5[%c0_158, %c0_159, %c16_160], %142 {strides = array<i32>} : memref<1x8x256xf32, #tpu.memory_space<vmem>>, vector<1x8x16xf32>,
    %143 = vector.extract_strided_slice %134 {offsets = [0, 36], sizes = [8, 16], strides = [1, 1]} : vector<8x288xf32> to vector<8x16xf32>
    %c0_161 = arith.constant 0 : index
    %c0_162 = arith.constant 0 : index
    %c32_163 = arith.constant 32 : index
    %144 = vector.load %arg5[%c0_161, %c0_162, %c32_163] : memref<1x8x256xf32, #tpu.memory_space<vmem>>, vector<1x8x16xf32>
    %145 = vector.shape_cast %144 : vector<1x8x16xf32> to vector<8x16xf32>
    %146 = vector.shape_cast %143 : vector<8x16xf32> to vector<1x8x16xf32>
    tpu.vector_store %arg5[%c0_161, %c0_162, %c32_163], %146 {strides = array<i32>} : memref<1x8x256xf32, #tpu.memory_space<vmem>>, vector<1x8x16xf32>,
    %147 = vector.extract_strided_slice %134 {offsets = [0, 54], sizes = [8, 16], strides = [1, 1]} : vector<8x288xf32> to vector<8x16xf32>
    %c0_164 = arith.constant 0 : index
    %c0_165 = arith.constant 0 : index
    %c48_166 = arith.constant 48 : index
    %148 = vector.load %arg5[%c0_164, %c0_165, %c48_166] : memref<1x8x256xf32, #tpu.memory_space<vmem>>, vector<1x8x16xf32>
    %149 = vector.shape_cast %148 : vector<1x8x16xf32> to vector<8x16xf32>
    %150 = vector.shape_cast %147 : vector<8x16xf32> to vector<1x8x16xf32>
    tpu.vector_store %arg5[%c0_164, %c0_165, %c48_166], %150 {strides = array<i32>} : memref<1x8x256xf32, #tpu.memory_space<vmem>>, vector<1x8x16xf32>,
    %151 = vector.extract_strided_slice %134 {offsets = [0, 72], sizes = [8, 16], strides = [1, 1]} : vector<8x288xf32> to vector<8x16xf32>
    %c0_167 = arith.constant 0 : index
    %c0_168 = arith.constant 0 : index
    %c64_169 = arith.constant 64 : index
    %152 = vector.load %arg5[%c0_167, %c0_168, %c64_169] : memref<1x8x256xf32, #tpu.memory_space<vmem>>, vector<1x8x16xf32>
    %153 = vector.shape_cast %152 : vector<1x8x16xf32> to vector<8x16xf32>
    %154 = vector.shape_cast %151 : vector<8x16xf32> to vector<1x8x16xf32>
    tpu.vector_store %arg5[%c0_167, %c0_168, %c64_169], %154 {strides = array<i32>} : memref<1x8x256xf32, #tpu.memory_space<vmem>>, vector<1x8x16xf32>,
    %155 = vector.extract_strided_slice %134 {offsets = [0, 90], sizes = [8, 16], strides = [1, 1]} : vector<8x288xf32> to vector<8x16xf32>
    %c0_170 = arith.constant 0 : index
    %c0_171 = arith.constant 0 : index
    %c80_172 = arith.constant 80 : index
    %156 = vector.load %arg5[%c0_170, %c0_171, %c80_172] : memref<1x8x256xf32, #tpu.memory_space<vmem>>, vector<1x8x16xf32>
    %157 = vector.shape_cast %156 : vector<1x8x16xf32> to vector<8x16xf32>
    %158 = vector.shape_cast %155 : vector<8x16xf32> to vector<1x8x16xf32>
    tpu.vector_store %arg5[%c0_170, %c0_171, %c80_172], %158 {strides = array<i32>} : memref<1x8x256xf32, #tpu.memory_space<vmem>>, vector<1x8x16xf32>,
    %159 = vector.extract_strided_slice %134 {offsets = [0, 108], sizes = [8, 16], strides = [1, 1]} : vector<8x288xf32> to vector<8x16xf32>
    %c0_173 = arith.constant 0 : index
    %c0_174 = arith.constant 0 : index
    %c96_175 = arith.constant 96 : index
    %160 = vector.load %arg5[%c0_173, %c0_174, %c96_175] : memref<1x8x256xf32, #tpu.memory_space<vmem>>, vector<1x8x16xf32>
    %161 = vector.shape_cast %160 : vector<1x8x16xf32> to vector<8x16xf32>
    %162 = vector.shape_cast %159 : vector<8x16xf32> to vector<1x8x16xf32>
    tpu.vector_store %arg5[%c0_173, %c0_174, %c96_175], %162 {strides = array<i32>} : memref<1x8x256xf32, #tpu.memory_space<vmem>>, vector<1x8x16xf32>,
    %163 = vector.extract_strided_slice %134 {offsets = [0, 126], sizes = [8, 16], strides = [1, 1]} : vector<8x288xf32> to vector<8x16xf32>
    %c0_176 = arith.constant 0 : index
    %c0_177 = arith.constant 0 : index
    %c112_178 = arith.constant 112 : index
    %164 = vector.load %arg5[%c0_176, %c0_177, %c112_178] : memref<1x8x256xf32, #tpu.memory_space<vmem>>, vector<1x8x16xf32>
    %165 = vector.shape_cast %164 : vector<1x8x16xf32> to vector<8x16xf32>
    %166 = vector.shape_cast %163 : vector<8x16xf32> to vector<1x8x16xf32>
    tpu.vector_store %arg5[%c0_176, %c0_177, %c112_178], %166 {strides = array<i32>} : memref<1x8x256xf32, #tpu.memory_space<vmem>>, vector<1x8x16xf32>,
    %167 = vector.extract_strided_slice %134 {offsets = [0, 144], sizes = [8, 16], strides = [1, 1]} : vector<8x288xf32> to vector<8x16xf32>
    %c0_179 = arith.constant 0 : index
    %c0_180 = arith.constant 0 : index
    %c128_181 = arith.constant 128 : index
    %168 = vector.load %arg5[%c0_179, %c0_180, %c128_181] : memref<1x8x256xf32, #tpu.memory_space<vmem>>, vector<1x8x16xf32>
    %169 = vector.shape_cast %168 : vector<1x8x16xf32> to vector<8x16xf32>
    %170 = vector.shape_cast %167 : vector<8x16xf32> to vector<1x8x16xf32>
    tpu.vector_store %arg5[%c0_179, %c0_180, %c128_181], %170 {strides = array<i32>} : memref<1x8x256xf32, #tpu.memory_space<vmem>>, vector<1x8x16xf32>,
    %171 = vector.extract_strided_slice %134 {offsets = [0, 162], sizes = [8, 16], strides = [1, 1]} : vector<8x288xf32> to vector<8x16xf32>
    %c0_182 = arith.constant 0 : index
    %c0_183 = arith.constant 0 : index
    %c144_184 = arith.constant 144 : index
    %172 = vector.load %arg5[%c0_182, %c0_183, %c144_184] : memref<1x8x256xf32, #tpu.memory_space<vmem>>, vector<1x8x16xf32>
    %173 = vector.shape_cast %172 : vector<1x8x16xf32> to vector<8x16xf32>
    %174 = vector.shape_cast %171 : vector<8x16xf32> to vector<1x8x16xf32>
    tpu.vector_store %arg5[%c0_182, %c0_183, %c144_184], %174 {strides = array<i32>} : memref<1x8x256xf32, #tpu.memory_space<vmem>>, vector<1x8x16xf32>,
    %175 = vector.extract_strided_slice %134 {offsets = [0, 180], sizes = [8, 16], strides = [1, 1]} : vector<8x288xf32> to vector<8x16xf32>
    %c0_185 = arith.constant 0 : index
    %c0_186 = arith.constant 0 : index
    %c160_187 = arith.constant 160 : index
    %176 = vector.load %arg5[%c0_185, %c0_186, %c160_187] : memref<1x8x256xf32, #tpu.memory_space<vmem>>, vector<1x8x16xf32>
    %177 = vector.shape_cast %176 : vector<1x8x16xf32> to vector<8x16xf32>
    %178 = vector.shape_cast %175 : vector<8x16xf32> to vector<1x8x16xf32>
    tpu.vector_store %arg5[%c0_185, %c0_186, %c160_187], %178 {strides = array<i32>} : memref<1x8x256xf32, #tpu.memory_space<vmem>>, vector<1x8x16xf32>,
    %179 = vector.extract_strided_slice %134 {offsets = [0, 198], sizes = [8, 16], strides = [1, 1]} : vector<8x288xf32> to vector<8x16xf32>
    %c0_188 = arith.constant 0 : index
    %c0_189 = arith.constant 0 : index
    %c176_190 = arith.constant 176 : index
    %180 = vector.load %arg5[%c0_188, %c0_189, %c176_190] : memref<1x8x256xf32, #tpu.memory_space<vmem>>, vector<1x8x16xf32>
    %181 = vector.shape_cast %180 : vector<1x8x16xf32> to vector<8x16xf32>
    %182 = vector.shape_cast %179 : vector<8x16xf32> to vector<1x8x16xf32>
    tpu.vector_store %arg5[%c0_188, %c0_189, %c176_190], %182 {strides = array<i32>} : memref<1x8x256xf32, #tpu.memory_space<vmem>>, vector<1x8x16xf32>,
    %183 = vector.extract_strided_slice %134 {offsets = [0, 216], sizes = [8, 16], strides = [1, 1]} : vector<8x288xf32> to vector<8x16xf32>
    %c0_191 = arith.constant 0 : index
    %c0_192 = arith.constant 0 : index
    %c192_193 = arith.constant 192 : index
    %184 = vector.load %arg5[%c0_191, %c0_192, %c192_193] : memref<1x8x256xf32, #tpu.memory_space<vmem>>, vector<1x8x16xf32>
    %185 = vector.shape_cast %184 : vector<1x8x16xf32> to vector<8x16xf32>
    %186 = vector.shape_cast %183 : vector<8x16xf32> to vector<1x8x16xf32>
    tpu.vector_store %arg5[%c0_191, %c0_192, %c192_193], %186 {strides = array<i32>} : memref<1x8x256xf32, #tpu.memory_space<vmem>>, vector<1x8x16xf32>,
    %187 = vector.extract_strided_slice %134 {offsets = [0, 234], sizes = [8, 16], strides = [1, 1]} : vector<8x288xf32> to vector<8x16xf32>
    %c0_194 = arith.constant 0 : index
    %c0_195 = arith.constant 0 : index
    %c208_196 = arith.constant 208 : index
    %188 = vector.load %arg5[%c0_194, %c0_195, %c208_196] : memref<1x8x256xf32, #tpu.memory_space<vmem>>, vector<1x8x16xf32>
    %189 = vector.shape_cast %188 : vector<1x8x16xf32> to vector<8x16xf32>
    %190 = vector.shape_cast %187 : vector<8x16xf32> to vector<1x8x16xf32>
    tpu.vector_store %arg5[%c0_194, %c0_195, %c208_196], %190 {strides = array<i32>} : memref<1x8x256xf32, #tpu.memory_space<vmem>>, vector<1x8x16xf32>,
    %191 = vector.extract_strided_slice %134 {offsets = [0, 252], sizes = [8, 16], strides = [1, 1]} : vector<8x288xf32> to vector<8x16xf32>
    %c0_197 = arith.constant 0 : index
    %c0_198 = arith.constant 0 : index
    %c224_199 = arith.constant 224 : index
    %192 = vector.load %arg5[%c0_197, %c0_198, %c224_199] : memref<1x8x256xf32, #tpu.memory_space<vmem>>, vector<1x8x16xf32>
    %193 = vector.shape_cast %192 : vector<1x8x16xf32> to vector<8x16xf32>
    %194 = vector.shape_cast %191 : vector<8x16xf32> to vector<1x8x16xf32>
    tpu.vector_store %arg5[%c0_197, %c0_198, %c224_199], %194 {strides = array<i32>} : memref<1x8x256xf32, #tpu.memory_space<vmem>>, vector<1x8x16xf32>,
    %195 = vector.extract_strided_slice %134 {offsets = [0, 270], sizes = [8, 16], strides = [1, 1]} : vector<8x288xf32> to vector<8x16xf32>
    %c0_200 = arith.constant 0 : index
    %c0_201 = arith.constant 0 : index
    %c240_202 = arith.constant 240 : index
    %196 = vector.load %arg5[%c0_200, %c0_201, %c240_202] : memref<1x8x256xf32, #tpu.memory_space<vmem>>, vector<1x8x16xf32>
    %197 = vector.shape_cast %196 : vector<1x8x16xf32> to vector<8x16xf32>
    %198 = vector.shape_cast %195 : vector<8x16xf32> to vector<1x8x16xf32>
    tpu.vector_store %arg5[%c0_200, %c0_201, %c240_202], %198 {strides = array<i32>} : memref<1x8x256xf32, #tpu.memory_space<vmem>>, vector<1x8x16xf32>,
    return
  }
  func.func @transform_0(%arg0: i32) -> (i32, i32, i32) {
    %c0_i32 = arith.constant 0 : i32
    %c0_i32_0 = arith.constant 0 : i32
    %c0_i32_1 = arith.constant 0 : i32
    return %arg0, %c0_i32, %c0_i32_0 : i32, i32, i32
  }
  func.func @transform_1(%arg0: i32) -> (i32, i32, i32) {
    %c0_i32 = arith.constant 0 : i32
    %c0_i32_0 = arith.constant 0 : i32
    %c0_i32_1 = arith.constant 0 : i32
    return %arg0, %c0_i32, %c0_i32_0 : i32, i32, i32
  }
  func.func @transform_2(%arg0: i32) -> (i32, i32) {
    %c0_i32 = arith.constant 0 : i32
    %c0_i32_0 = arith.constant 0 : i32
    %c0_i32_1 = arith.constant 0 : i32
    return %c0_i32, %c0_i32_0 : i32, i32
  }
  func.func @transform_3(%arg0: i32) -> (i32, i32) {
    %c0_i32 = arith.constant 0 : i32
    %c0_i32_0 = arith.constant 0 : i32
    %c0_i32_1 = arith.constant 0 : i32
    return %c0_i32, %c0_i32_0 : i32, i32
  }
  func.func @transform_4(%arg0: i32) -> (i32, i32, i32) {
    %c0_i32 = arith.constant 0 : i32
    %c0_i32_0 = arith.constant 0 : i32
    %c0_i32_1 = arith.constant 0 : i32
    return %arg0, %c0_i32, %c0_i32_0 : i32, i32, i32
  }
}

</mosaic_0001>

<llo_original>
// kernel: model_forward.1
$region0: #{model_forward.1}
  #allocation0 [shape = 'u32[]', space=smem, size = 0x4, offset = 0x4, fixed_abs, tag = 'smem constant byte address 0x4 - core index']
  #allocation1 [shape = 'u32[144,128]{1,0:T(1,128)}', space=vmem, size = 0x12000, scoped, tag = 'internal scratch']
  #allocation2 [shape = 'f32[3,342]{1,0:T(4,128)}', space=vmem, size = 0x1800, scoped, tag = 'scratch operand']
  #allocation3 [shape = 'f32[3,342]{1,0:T(4,128)}', space=vmem, size = 0x1800, scoped, tag = 'scratch operand']
  #allocation4 [shape = 'f32[54,288]{1,0:T(8,128)}', space=vmem, size = 0x15000, scoped, tag = 'scratch operand']
  %s0 = inlined_call_operand.vmem [shape: f32[2,3,144], index: 0, kind: input, shape index: {}]
  %s1 = inlined_call_operand.vmem [shape: f32[2,3,256], index: 1, kind: input, shape index: {}]
  %s2 = inlined_call_operand.vmem [shape: f32[8,54], index: 2, kind: input, shape index: {}]
  %s3 = inlined_call_operand.vmem [shape: f32[8,1], index: 3, kind: input, shape index: {}]
  %s4 = inlined_call_operand.vmem [shape: f32[2,8,256], index: 4, kind: output, shape index: {}]
  %s5 = sld [smem:[#allocation0]]
  $region49: #{model_forward.1} parent=0
    _
  %s7 = ssub.s32 1, %s5
  %s8 = scalar_select 0, %s7, %s5
  loop: start=0, step=1, limit=4
  $region2: #{model_forward.1} parent=0 // loop_pre_header
    _
  $region3: #{model_forward.1} parent=0 // loop_header
    %s10 = sphi 0, %s14
    %p11 = scmp.ge.s32.totalorder %s10, 4
    %s20 = sphi 0, %s22
    %s23 = sphi 0, %s20
    %s24 = sphi 0, %s23
    %s40 = sphi 0, %s24
    %s46 = sphi 0, %s48
    %s49 = sphi 0, %s46
    %s50 = sphi 0, %s49
    %s66 = sphi 0, %s50
    %s70 = sphi 0, %s70
    %s72 = sphi 0, %s70
    %s73 = sphi 0, %s72
    %s87 = sphi 0, %s73
    %s91 = sphi 0, %s91
    %s93 = sphi 0, %s91
    %s94 = sphi 0, %s93
    %s108 = sphi 0, %s94
    %s114 = sphi 0, %s116
    %s117 = sphi 0, %s114
    %s118 = sphi 0, %s117
    %s134 = sphi 0, %s118
  $region4: #{model_forward.1} parent=0 // loop_header_branch
    %13 = sbr.rel (%p11) target = $region8
  $region5: #{model_forward.1} parent=0 // loop_body
    %s15 = ssub.s32 %s10, 1
    %s16 = ssub.s32 %s10, 2
    %s17 = sadd.s32 %s10, 1
    %s18 = ssub.s32 %s10, %s17
    %p19 = scmp.eq.s32.totalorder %s18, 0
    %s21 = sadd.s32 %s20, 1
    %s22 = scalar_select %p19, %s20, %s21
    %p25 = pneg %p19
    %p26 = scmp.eq.s32.totalorder %s10, 1
    %p27 = por %p25, %p26
    %p28 = scmp.ne.s32.totalorder %s20, %s23
    %p29 = scmp.eq.s32.totalorder %s10, 0
    %p30 = por %p28, %p29
    %p31 = scmp.ne.s32.totalorder %s20, %s23
    %p32 = scmp.eq.s32.totalorder %s15, 1
    %p33 = por %p31, %p32
    %p34 = scmp.ne.s32.totalorder %s23, %s24
    %p35 = scmp.eq.s32.totalorder %s15, 0
    %p36 = por %p34, %p35
    %p37 = scmp.ne.s32.totalorder %s23, %s24
    %p38 = scmp.eq.s32.totalorder %s16, 1
    %p39 = por %p37, %p38
    %p41 = scmp.ne.s32.totalorder %s24, %s40
    %p42 = scmp.eq.s32.totalorder %s16, 0
    %p43 = por %p41, %p42
    %s44 = ssub.s32 %s10, %s17
    %p45 = scmp.eq.s32.totalorder %s44, 0
    %s47 = sadd.s32 %s46, 1
    %s48 = scalar_select %p45, %s46, %s47
    %p51 = pneg %p45
    %p52 = scmp.eq.s32.totalorder %s10, 1
    %p53 = por %p51, %p52
    %p54 = scmp.ne.s32.totalorder %s46, %s49
    %p55 = scmp.eq.s32.totalorder %s10, 0
    %p56 = por %p54, %p55
    %p57 = scmp.ne.s32.totalorder %s46, %s49
    %p58 = scmp.eq.s32.totalorder %s15, 1
    %p59 = por %p57, %p58
    %p60 = scmp.ne.s32.totalorder %s49, %s50
    %p61 = scmp.eq.s32.totalorder %s15, 0
    %p62 = por %p60, %p61
    %p63 = scmp.ne.s32.totalorder %s49, %s50
    %p64 = scmp.eq.s32.totalorder %s16, 1
    %p65 = por %p63, %p64
    %p67 = scmp.ne.s32.totalorder %s50, %s66
    %p68 = scmp.eq.s32.totalorder %s16, 0
    %p69 = por %p67, %p68
    %s71 = sadd.s32 %s70, 1
    %p74 = scmp.eq.s32.totalorder %s10, 1
    %p75 = scmp.ne.s32.totalorder %s70, %s72
    %p76 = scmp.eq.s32.totalorder %s10, 0
    %p77 = por %p75, %p76
    %p78 = scmp.ne.s32.totalorder %s70, %s72
    %p79 = scmp.eq.s32.totalorder %s15, 1
    %p80 = por %p78, %p79
    %p81 = scmp.ne.s32.totalorder %s72, %s73
    %p82 = scmp.eq.s32.totalorder %s15, 0
    %p83 = por %p81, %p82
    %p84 = scmp.ne.s32.totalorder %s72, %s73
    %p85 = scmp.eq.s32.totalorder %s16, 1
    %p86 = por %p84, %p85
    %p88 = scmp.ne.s32.totalorder %s73, %s87
    %p89 = scmp.eq.s32.totalorder %s16, 0
    %p90 = por %p88, %p89
    %s92 = sadd.s32 %s91, 1
    %p95 = scmp.eq.s32.totalorder %s10, 1
    %p96 = scmp.ne.s32.totalorder %s91, %s93
    %p97 = scmp.eq.s32.totalorder %s10, 0
    %p98 = por %p96, %p97
    %p99 = scmp.ne.s32.totalorder %s91, %s93
    %p100 = scmp.eq.s32.totalorder %s15, 1
    %p101 = por %p99, %p100
    %p102 = scmp.ne.s32.totalorder %s93, %s94
    %p103 = scmp.eq.s32.totalorder %s15, 0
    %p104 = por %p102, %p103
    %p105 = scmp.ne.s32.totalorder %s93, %s94
    %p106 = scmp.eq.s32.totalorder %s16, 1
    %p107 = por %p105, %p106
    %p109 = scmp.ne.s32.totalorder %s94, %s108
    %p110 = scmp.eq.s32.totalorder %s16, 0
    %p111 = por %p109, %p110
    %s112 = ssub.s32 %s10, %s17
    %p113 = scmp.eq.s32.totalorder %s112, 0
    %s115 = sadd.s32 %s114, 1
    %s116 = scalar_select %p113, %s114, %s115
    %p119 = pneg %p113
    %p120 = scmp.eq.s32.totalorder %s10, 1
    %p121 = por %p119, %p120
    %p122 = scmp.ne.s32.totalorder %s114, %s117
    %p123 = scmp.eq.s32.totalorder %s10, 0
    %p124 = por %p122, %p123
    %p125 = scmp.ne.s32.totalorder %s114, %s117
    %p126 = scmp.eq.s32.totalorder %s15, 1
    %p127 = por %p125, %p126
    %p128 = scmp.ne.s32.totalorder %s117, %s118
    %p129 = scmp.eq.s32.totalorder %s15, 0
    %p130 = por %p128, %p129
    %p131 = scmp.ne.s32.totalorder %s117, %s118
    %p132 = scmp.eq.s32.totalorder %s16, 1
    %p133 = por %p131, %p132
    %p135 = scmp.ne.s32.totalorder %s118, %s134
    %p136 = scmp.eq.s32.totalorder %s16, 0
    %p137 = por %p135, %p136
    %p138 = scmp.le.s32.totalorder 1, %s10
    %p139 = scmp.lt.s32.totalorder %s10, 3
    %p140 = pnand %p138, %p139
    %p141 = pneg %p140
    // Predicated region
    $region9: #{model_forward.1} parent=5 // pred_check
      _
    $region10: #{model_forward.1} parent=5 // pred_check_branch
      %143 = sbr.rel (%p140) target = $region12
    $region11: #{model_forward.1} parent=5 // pred_region
      %s144 = ssub.s32 %s10, 1
      // Predicated region
      $region13: #{model_forward.1} parent=11 // pred_check
        %p145 = pneg %p83
      $region14: #{model_forward.1} parent=11 // pred_check_branch
        %147 = sbr.rel (%p145) target = $region16
      $region15: #{model_forward.1} parent=11 // pred_region
        _
      $region16: #{model_forward.1} parent=11 // pred_fallthru
        _
      // Predicated region
      $region17: #{model_forward.1} parent=11 // pred_check
        %p148 = pneg %p104
      $region18: #{model_forward.1} parent=11 // pred_check_branch
        %150 = sbr.rel (%p148) target = $region20
      $region19: #{model_forward.1} parent=11 // pred_region
        _
      $region20: #{model_forward.1} parent=11 // pred_fallthru
        _
    $region12: #{model_forward.1} parent=5 // pred_fallthru
      _
    %p151 = scmp.lt.s32.totalorder %s10, 2
    // Predicated region
    $region21: #{model_forward.1} parent=5 // pred_check
      %p152 = pneg %p151
    $region22: #{model_forward.1} parent=5 // pred_check_branch
      %154 = sbr.rel (%p152) target = $region24
    $region23: #{model_forward.1} parent=5 // pred_region
      // Predicated region
      $region25: #{model_forward.1} parent=23 // pred_check
        %p155 = pneg %p30
      $region26: #{model_forward.1} parent=23 // pred_check_branch
        %157 = sbr.rel (%p155) target = $region28
      $region27: #{model_forward.1} parent=23 // pred_region
        %p158 = scmp.lt.s32.totalorder %s10, 1
        %s159 = scalar_select %p158, %s10, 1
        %s160 = smul.addr %s159, 2
        %s161 = smul.addr %s160, 4
        %s162 = scalar_lea.vmem %s0, %s161
      $region28: #{model_forward.1} parent=23 // pred_fallthru
        _
      // Predicated region
      $region29: #{model_forward.1} parent=23 // pred_check
        %p163 = pneg %p56
      $region30: #{model_forward.1} parent=23 // pred_check_branch
        %165 = sbr.rel (%p163) target = $region32
      $region31: #{model_forward.1} parent=23 // pred_region
        %p166 = scmp.lt.s32.totalorder %s10, 1
        %s167 = scalar_select %p166, %s10, 1
        %s168 = smul.addr %s167, 2
        %s169 = smul.addr %s168, 4
        %s170 = scalar_lea.vmem %s1, %s169
      $region32: #{model_forward.1} parent=23 // pred_fallthru
        _
    $region24: #{model_forward.1} parent=5 // pred_fallthru
      _
    %p171 = scmp.le.s32.totalorder 1, %s10
    %p172 = scmp.lt.s32.totalorder %s10, 3
    %p173 = pnand %p171, %p172
    %p174 = pneg %p173
    // Predicated region
    $region33: #{model_forward.1} parent=5 // pred_check
      _
    $region34: #{model_forward.1} parent=5 // pred_check_branch
      %176 = sbr.rel (%p173) target = $region36
    $region35: #{model_forward.1} parent=5 // pred_region
      %s177 = ssub.s32 %s10, 1
      %p178 = scmp.lt.s32.totalorder %s15, 1
      %s179 = scalar_select %p178, %s15, 1
      %s180 = smul.addr %s179, 2
      %s181 = smul.addr %s180, 4
      %s182 = scalar_lea.vmem %s0, %s181
      %p183 = pneg %p36
      %p184 = pneg %p33
      %p185 = scmp.lt.s32.totalorder %s15, 1
      %s186 = scalar_select %p185, %s15, 1
      %s187 = smul.addr %s186, 2
      %s188 = smul.addr %s187, 4
      %s189 = scalar_lea.vmem %s1, %s188
      %p190 = pneg %p62
      %p191 = pneg %p59
      %p192 = pneg %p83
      %p193 = pneg %p80
      %p194 = pneg %p104
      %p195 = pneg %p101
      %p196 = pneg %p130
      %p197 = pneg %p127
      %p198 = scmp.lt.s32.totalorder %s15, 1
      %s199 = scalar_select %p198, %s15, 1
      %s200 = smul.addr %s199, 2
      %s201 = smul.addr %s200, 8
      %s202 = scalar_lea.vmem %s4, %s201
      %p203 = scmp.lt.s32.totalorder %s15, 1
      %s204 = scalar_select %p203, %s15, 1
      %s205 = smul.addr %s204, 2
      %s206 = smul.addr %s205, 4
      %s207 = scalar_lea.vmem %s0, %s206
      %p208 = scmp.lt.s32.totalorder %s15, 1
      %s209 = scalar_select %p208, %s15, 1
      %s210 = smul.addr %s209, 2
      %s211 = smul.addr %s210, 4
      %s212 = scalar_lea.vmem %s1, %s211
      %p213 = scmp.lt.s32.totalorder %s15, 1
      %s214 = scalar_select %p213, %s15, 1
      %s215 = smul.addr %s214, 2
      %s216 = smul.addr %s215, 8
      %s217 = scalar_lea.vmem %s4, %s216
      %218 = vst [vmem:[#allocation2] sm:$0x77] 0.0
      %vm219 = vcmask 698368
      %220 = vst.msk [vmem:[#allocation2 + $0x8] sm:$0x7] %vm219, 0.0
      %221 = vst [vmem:[#allocation3] sm:$0x77] 0.0
      %222 = vst.msk [vmem:[#allocation3 + $0x8] sm:$0x7] %vm219, 0.0
      %v223 = vld [vmem:[%s207] sm:$0x7]
      %225 = vrot.lane.b32.xlu0 %v223, 57
      %v226 = vpop.permute.xlu0 %225
      %vm228 = vcmask 559560
      %229 = vst.msk [vmem:[#allocation2] sm:$0x7] %vm228, %v226
      %v230 = vld [vmem:[%s207] sm:$0x7]
      %232 = vrot.lane.b32.xlu0 %v230, 63
      %v233 = vpop.permute.xlu0 %232
      %vm235 = vcmask 707160
      %236 = vst.msk [vmem:[#allocation2] sm:$0x7] %vm235, %v233
      %v237 = vld [vmem:[%s207] sm:$0x7]
      %239 = vrot.lane.b32.xlu0 %v237, 69
      %v240 = vpop.permute.xlu0 %239
      %vm242 = vcmask 854760
      %243 = vst.msk [vmem:[#allocation2] sm:$0x7] %vm242, %v240
      %v244 = vld [vmem:[%s207] sm:$0x7]
      %246 = vrot.lane.b32.xlu0 %v244, 75
      %v247 = vpop.permute.xlu0 %246
      %vm249 = vcmask 1002360
      %250 = vst.msk [vmem:[#allocation2] sm:$0x7] %vm249, %v247
      %v251 = vld [vmem:[%s207] sm:$0x7]
      %253 = vrot.lane.b32.xlu0 %v251, 81
      %v254 = vpop.permute.xlu0 %253
      %vm256 = vcmask 100360
      %257 = vst.msk [vmem:[#allocation2 + $0x4] sm:$0x7] %vm256, %v254
      %v258 = vld [vmem:[%s207] sm:$0x7]
      %260 = vrot.lane.b32.xlu0 %v258, 87
      %v261 = vpop.permute.xlu0 %260
      %vm263 = vcmask 247960
      %264 = vst.msk [vmem:[#allocation2 + $0x4] sm:$0x7] %vm263, %v261
      %v265 = vld [vmem:[%s207] sm:$0x7]
      %267 = vrot.lane.b32.xlu0 %v265, 93
      %v268 = vpop.permute.xlu0 %267
      %vm270 = vcmask 395560
      %271 = vst.msk [vmem:[#allocation2 + $0x4] sm:$0x7] %vm270, %v268
      %v272 = vld [vmem:[%s207] sm:$0x7]
      %274 = vrot.lane.b32.xlu0 %v272, 99
      %v275 = vpop.permute.xlu0 %274
      %vm277 = vcmask 543160
      %278 = vst.msk [vmem:[#allocation2 + $0x4] sm:$0x7] %vm277, %v275
      %v279 = vld [vmem:[%s207] sm:$0x7]
      %281 = vrot.lane.b32.xlu0 %v279, 105
      %v282 = vpop.permute.xlu0 %281
      %vm284 = vcmask 690760
      %285 = vst.msk [vmem:[#allocation2 + $0x4] sm:$0x7] %vm284, %v282
      %v286 = vld [vmem:[%s207] sm:$0x7]
      %288 = vrot.lane.b32.xlu0 %v286, 111
      %v289 = vpop.permute.xlu0 %288
      %vm291 = vcmask 838360
      %292 = vst.msk [vmem:[#allocation2 + $0x4] sm:$0x7] %vm291, %v289
      %v293 = vld [vmem:[%s207] sm:$0x77]
      %295 = vrot.lane.b32.xlu0 %v293, 117
      %v296 = vpop.permute.xlu0 %295
      %v297 = vrot.slane %v296, 4
      %vm298 = vcmask 957440
      %v299 = vsel %vm298, %v296, %v297
      %vm301 = vcmask 985960
      %302 = vst.msk [vmem:[#allocation2 + $0x4] sm:$0x7] %vm301, %v299
      %v303 = vld [vmem:[%s207 + $0x4] sm:$0x7]
      %305 = vrot.lane.b32.xlu0 %v303, 123
      %v306 = vpop.permute.xlu0 %305
      %v307 = vrot.slane %v306, 4
      %vm308 = vcmask 1006592
      %v309 = vsel %vm308, %v307, %v306
      %vm311 = vcmask 1043448
      %vm312 = vcmask 88068
      %vm313 = vmor %vm312, %vm311
      %314 = vst.msk [vmem:[#allocation2 + $0x4] sm:$0x77] %vm313, %v309
      %v315 = vld [vmem:[%s212] sm:$0x7]
      %317 = vrot.lane.b32.xlu0 %v315, 19
      %v318 = vpop.permute.xlu0 %317
      %vm320 = vcmask 280728
      %321 = vst.msk [vmem:[#allocation3] sm:$0x7] %vm320, %v318
      %v322 = vld [vmem:[%s212] sm:$0x7]
      %324 = vrot.lane.b32.xlu0 %v322, 21
      %v325 = vpop.permute.xlu0 %324
      %vm327 = vcmask 428328
      %328 = vst.msk [vmem:[#allocation3] sm:$0x7] %vm327, %v325
      %v329 = vld [vmem:[%s212] sm:$0x7]
      %331 = vrot.lane.b32.xlu0 %v329, 23
      %v332 = vpop.permute.xlu0 %331
      %vm334 = vcmask 575928
      %335 = vst.msk [vmem:[#allocation3] sm:$0x7] %vm334, %v332
      %v336 = vld [vmem:[%s212] sm:$0x7]
      %338 = vrot.lane.b32.xlu0 %v336, 25
      %v339 = vpop.permute.xlu0 %338
      %vm341 = vcmask 723528
      %342 = vst.msk [vmem:[#allocation3] sm:$0x7] %vm341, %v339
      %v343 = vld [vmem:[%s212] sm:$0x7]
      %345 = vrot.lane.b32.xlu0 %v343, 27
      %v346 = vpop.permute.xlu0 %345
      %vm348 = vcmask 871128
      %349 = vst.msk [vmem:[#allocation3] sm:$0x7] %vm348, %v346
      %v350 = vld [vmem:[%s212] sm:$0x7]
      %352 = vrot.lane.b32.xlu0 %v350, 29
      %v353 = vpop.permute.xlu0 %352
      %vm355 = vcmask 1018728
      %356 = vst.msk [vmem:[#allocation3] sm:$0x7] %vm355, %v353
      %v357 = vld [vmem:[%s212] sm:$0x7]
      %359 = vrot.lane.b32.xlu0 %v357, 31
      %v360 = vpop.permute.xlu0 %359
      %v361 = vrot.slane %v360, 4
      %vm362 = vcmask 252928
      %v363 = vsel %vm362, %v361, %v360
      %vm365 = vcmask 120836
      %vm366 = vmor %vm365, %vm311
      %367 = vst.msk [vmem:[#allocation3] sm:$0x77] %vm366, %v363
      %v368 = vld [vmem:[%s212] sm:$0x7]
      %370 = vrot.lane.b32.xlu0 %v368, 33
      %v371 = vpop.permute.xlu0 %370
      %vm373 = vcmask 264328
      %374 = vst.msk [vmem:[#allocation3 + $0x4] sm:$0x7] %vm373, %v371
      %v375 = vld [vmem:[%s212 + $0x4] sm:$0x7]
      %377 = vrot.lane.b32.xlu0 %v375, 35
      %v378 = vpop.permute.xlu0 %377
      %vm380 = vcmask 411928
      %381 = vst.msk [vmem:[#allocation3 + $0x4] sm:$0x7] %vm380, %v378
      %v382 = vld [vmem:[%s212 + $0x4] sm:$0x7]
      %384 = vrot.lane.b32.xlu0 %v382, 37
      %v385 = vpop.permute.xlu0 %384
      %vm387 = vcmask 559528
      %388 = vst.msk [vmem:[#allocation3 + $0x4] sm:$0x7] %vm387, %v385
      %v389 = vld [vmem:[%s212 + $0x4] sm:$0x7]
      %391 = vrot.lane.b32.xlu0 %v389, 39
      %v392 = vpop.permute.xlu0 %391
      %vm394 = vcmask 707128
      %395 = vst.msk [vmem:[#allocation3 + $0x4] sm:$0x7] %vm394, %v392
      %v396 = vld [vmem:[%s212 + $0x4] sm:$0x7]
      %398 = vrot.lane.b32.xlu0 %v396, 41
      %v399 = vpop.permute.xlu0 %398
      %vm401 = vcmask 854728
      %402 = vst.msk [vmem:[#allocation3 + $0x4] sm:$0x7] %vm401, %v399
      %v403 = vld [vmem:[%s212 + $0x4] sm:$0x7]
      %405 = vrot.lane.b32.xlu0 %v403, 43
      %v406 = vpop.permute.xlu0 %405
      %vm408 = vcmask 1002328
      %409 = vst.msk [vmem:[#allocation3 + $0x4] sm:$0x7] %vm408, %v406
      %v410 = vld [vmem:[%s212 + $0x4] sm:$0x7]
      %412 = vrot.lane.b32.xlu0 %v410, 45
      %v413 = vpop.permute.xlu0 %412
      %v414 = vrot.slane %v413, 4
      %vm415 = vcmask 367616
      %v416 = vsel %vm415, %v414, %v413
      %vm418 = vcmask 1043432
      %vm419 = vcmask 104452
      %vm420 = vmor %vm419, %vm418
      %421 = vst.msk [vmem:[#allocation3 + $0x4] sm:$0x77] %vm420, %v416
      %v422 = vld [vmem:[%s212 + $0x4] sm:$0x7]
      %424 = vrot.lane.b32.xlu0 %v422, 47
      %v425 = vpop.permute.xlu0 %424
      %vm427 = vcmask 247928
      %428 = vst.msk [vmem:[#allocation3 + $0x8] sm:$0x7] %vm427, %v425
      %v429 = vld [vmem:[%s212 + $0x4] sm:$0x7]
      %431 = vrot.lane.b32.xlu0 %v429, 49
      %v432 = vpop.permute.xlu0 %431
      %vm434 = vcmask 395528
      %435 = vst.msk [vmem:[#allocation3 + $0x8] sm:$0x7] %vm434, %v432
      %v436 = vld [vmem:[#allocation2] sm:$0x77]
      %v437 = vld [vmem:[#allocation2 + $0x8] sm:$0x7]
      %v439 = vcombine.high %v436, %v436
      %441 = vst [vmem:[#allocation4] sm:$0x7] %v436
      %442 = vst [vmem:[#allocation4 + $0x8] sm:$0x7] %v439
      %vm443 = vcmask 256000
      %444 = vst.msk [vmem:[#allocation4 + $0x10] sm:$0x7] %vm443, %v437
      %v445 = vld [vmem:[#allocation2] sm:$0x77]
      %v446 = vld [vmem:[#allocation2 + $0x8] sm:$0x7]
      %v449 = vcombine.high %v445, %v445
      %v450 = vrot.slane %v445, 5
      %v451 = vrot.slane %v449, 5
      %v452 = vrot.slane %v446, 5
      %453 = vrot.lane.b32.xlu0 %v450, 127
      %v454 = vpop.permute.xlu0 %453
      %455 = vrot.lane.b32.xlu0 %v451, 127
      %v456 = vpop.permute.xlu0 %455
      %457 = vrot.lane.b32.xlu0 %v452, 127
      %v458 = vpop.permute.xlu0 %457
      %vm459 = vcmask 1039360
      %v460 = vsel %vm459, %v454, %v456
      %v461 = vsel %vm459, %v456, %v458
      %465 = vst [vmem:[#allocation4] sm:$0x38] %v460
      %466 = vst [vmem:[#allocation4 + $0x8] sm:$0x38] %v461
      %vm467 = vcmask 259075
      %468 = vst.msk [vmem:[#allocation4 + $0x10] sm:$0x38] %vm467, %v458
      %v469 = vld [vmem:[#allocation2] sm:$0x77]
      %v470 = vld [vmem:[#allocation2 + $0x8] sm:$0x7]
      %v473 = vcombine.high %v469, %v469
      %v474 = vrot.slane %v469, 2
      %v475 = vrot.slane %v473, 2
      %v476 = vrot.slane %v470, 2
      %477 = vrot.lane.b32.xlu0 %v474, 126
      %v478 = vpop.permute.xlu0 %477
      %479 = vrot.lane.b32.xlu0 %v475, 126
      %v480 = vpop.permute.xlu0 %479
      %481 = vrot.lane.b32.xlu0 %v476, 126
      %v482 = vpop.permute.xlu0 %481
      %vm483 = vcmask 1031168
      %v484 = vsel %vm483, %v478, %v480
      %v485 = vsel %vm483, %v480, %v482
      %489 = vst [vmem:[#allocation4] sm:$0xc0] %v484
      %490 = vst [vmem:[#allocation4 + $0x8] sm:$0xc0] %v485
      %vm491 = vcmask 261126
      %492 = vst.msk [vmem:[#allocation4 + $0x10] sm:$0xc0] %vm491, %v482
      %493 = vst [vmem:[#allocation4 + $0x18] sm:$0x1] %v484
      %494 = vst [vmem:[#allocation4 + $0x20] sm:$0x1] %v485
      %vm495 = vcmask 253952
      %496 = vst.msk [vmem:[#allocation4 + $0x28] sm:$0x1] %vm495, %v482
      %v497 = vld [vmem:[#allocation2] sm:$0x77]
      %v498 = vld [vmem:[#allocation2 + $0x8] sm:$0x7]
      %v501 = vcombine.high %v497, %v497
      %v502 = vrot.slane %v497, 7
      %v503 = vrot.slane %v501, 7
      %v504 = vrot.slane %v498, 7
      %505 = vrot.lane.b32.xlu0 %v502, 110
      %v506 = vpop.permute.xlu0 %505
      %507 = vrot.lane.b32.xlu0 %v503, 110
      %v508 = vpop.permute.xlu0 %507
      %509 = vrot.lane.b32.xlu0 %v504, 110
      %v510 = vpop.permute.xlu0 %509
      %vm511 = vcmask 900096
      %v512 = vsel %vm511, %v506, %v508
      %v513 = vsel %vm511, %v508, %v510
      %517 = vst [vmem:[#allocation4 + $0x18] sm:$0xe] %v512
      %518 = vst [vmem:[#allocation4 + $0x20] sm:$0xe] %v513
      %vm519 = vcmask 257025
      %520 = vst.msk [vmem:[#allocation4 + $0x28] sm:$0xe] %vm519, %v510
      %v521 = vld [vmem:[#allocation2] sm:$0x77]
      %v522 = vld [vmem:[#allocation2 + $0x8] sm:$0x7]
      %v525 = vcombine.low %v521, %v521
      %v526 = vcombine.low %v522, %v522
      %527 = vrot.lane.b32.xlu0 %v525, 109
      %v528 = vpop.permute.xlu0 %527
      %529 = vrot.lane.b32.xlu0 %v521, 109
      %v530 = vpop.permute.xlu0 %529
      %531 = vrot.lane.b32.xlu0 %v526, 109
      %v532 = vpop.permute.xlu0 %531
      %vm533 = vcmask 891904
      %v534 = vsel %vm533, %v528, %v530
      %v535 = vsel %vm533, %v530, %v532
      %539 = vst [vmem:[#allocation4 + $0x18] sm:$0x70] %v534
      %540 = vst [vmem:[#allocation4 + $0x20] sm:$0x70] %v535
      %vm541 = vcmask 260100
      %542 = vst.msk [vmem:[#allocation4 + $0x28] sm:$0x70] %vm541, %v532
      %v543 = vld [vmem:[#allocation2] sm:$0x77]
      %v544 = vld [vmem:[#allocation2 + $0x8] sm:$0x7]
      %v547 = vcombine.high %v543, %v543
      %v548 = vrot.slane %v543, 1
      %v549 = vrot.slane %v547, 1
      %v550 = vrot.slane %v544, 1
      %551 = vrot.lane.b32.xlu0 %v548, 108
      %v552 = vpop.permute.xlu0 %551
      %553 = vrot.lane.b32.xlu0 %v549, 108
      %v554 = vpop.permute.xlu0 %553
      %555 = vrot.lane.b32.xlu0 %v550, 108
      %v556 = vpop.permute.xlu0 %555
      %vm557 = vcmask 883712
      %v558 = vsel %vm557, %v552, %v554
      %v559 = vsel %vm557, %v554, %v556
      %563 = vst [vmem:[#allocation4 + $0x18] sm:$0x80] %v558
      %564 = vst [vmem:[#allocation4 + $0x20] sm:$0x80] %v559
      %vm565 = vcmask 261127
      %566 = vst.msk [vmem:[#allocation4 + $0x28] sm:$0x80] %vm565, %v556
      %567 = vst [vmem:[#allocation4 + $0x30] sm:$0x3] %v558
      %568 = vst [vmem:[#allocation4 + $0x38] sm:$0x3] %v559
      %vm569 = vcmask 254976
      %570 = vst.msk [vmem:[#allocation4 + $0x40] sm:$0x3] %vm569, %v556
      %v571 = vld [vmem:[#allocation2] sm:$0x77]
      %v572 = vld [vmem:[#allocation2 + $0x8] sm:$0x7]
      %v575 = vcombine.high %v571, %v571
      %v576 = vrot.slane %v571, 6
      %v577 = vrot.slane %v575, 6
      %v578 = vrot.slane %v572, 6
      %579 = vrot.lane.b32.xlu0 %v576, 92
      %v580 = vpop.permute.xlu0 %579
      %581 = vrot.lane.b32.xlu0 %v577, 92
      %v582 = vpop.permute.xlu0 %581
      %583 = vrot.lane.b32.xlu0 %v578, 92
      %v584 = vpop.permute.xlu0 %583
      %vm585 = vcmask 752640
      %v586 = vsel %vm585, %v580, %v582
      %v587 = vsel %vm585, %v582, %v584
      %591 = vst [vmem:[#allocation4 + $0x30] sm:$0x1c] %v586
      %592 = vst [vmem:[#allocation4 + $0x38] sm:$0x1c] %v587
      %vm593 = vcmask 258050
      %594 = vst.msk [vmem:[#allocation4 + $0x40] sm:$0x1c] %vm593, %v584
      %v595 = vld [vmem:[#allocation2] sm:$0x77]
      %v596 = vld [vmem:[#allocation2 + $0x8] sm:$0x7]
      %v599 = vcombine.high %v595, %v595
      %v600 = vrot.slane %v595, 3
      %v601 = vrot.slane %v599, 3
      %v602 = vrot.slane %v596, 3
      %603 = vrot.lane.b32.xlu0 %v600, 91
      %v604 = vpop.permute.xlu0 %603
      %605 = vrot.lane.b32.xlu0 %v601, 91
      %v606 = vpop.permute.xlu0 %605
      %607 = vrot.lane.b32.xlu0 %v602, 91
      %v608 = vpop.permute.xlu0 %607
      %vm609 = vcmask 744448
      %v610 = vsel %vm609, %v604, %v606
      %v611 = vsel %vm609, %v606, %v608
      %615 = vst [vmem:[#allocation4 + $0x30] sm:$0xe0] %v610
      %616 = vst [vmem:[#allocation4 + $0x38] sm:$0xe0] %v611
      %vm617 = vcmask 261125
      %618 = vst.msk [vmem:[#allocation4 + $0x40] sm:$0xe0] %vm617, %v608
      %v619 = vld [vmem:[#allocation2] sm:$0x77]
      %v620 = vld [vmem:[#allocation2 + $0x8] sm:$0x7]
      %v623 = vcombine.high %v619, %v619
      %624 = vrot.lane.b32.xlu0 %v619, 90
      %v625 = vpop.permute.xlu0 %624
      %626 = vrot.lane.b32.xlu0 %v623, 90
      %v627 = vpop.permute.xlu0 %626
      %628 = vrot.lane.b32.xlu0 %v620, 90
      %v629 = vpop.permute.xlu0 %628
      %vm630 = vcmask 736256
      %v631 = vsel %vm630, %v625, %v627
      %v632 = vsel %vm630, %v627, %v629
      %636 = vst [vmem:[#allocation4 + $0x48] sm:$0x7] %v631
      %637 = vst [vmem:[#allocation4 + $0x50] sm:$0x7] %v632
      %638 = vst.msk [vmem:[#allocation4 + $0x58] sm:$0x7] %vm443, %v629
      %v639 = vld [vmem:[#allocation3] sm:$0x77]
      %v640 = vld [vmem:[#allocation3 + $0x8] sm:$0x7]
      %v643 = vcombine.high %v639, %v639
      %v644 = vrot.slane %v639, 5
      %v645 = vrot.slane %v643, 5
      %v646 = vrot.slane %v640, 5
      %650 = vst [vmem:[#allocation4 + $0x48] sm:$0x38] %v644
      %651 = vst [vmem:[#allocation4 + $0x50] sm:$0x38] %v645
      %652 = vst.msk [vmem:[#allocation4 + $0x58] sm:$0x38] %vm467, %v646
      %v653 = vld [vmem:[#allocation3] sm:$0x77]
      %v654 = vld [vmem:[#allocation3 + $0x8] sm:$0x7]
      %v657 = vcombine.high %v653, %v653
      %v658 = vrot.slane %v653, 2
      %v659 = vrot.slane %v657, 2
      %v660 = vrot.slane %v654, 2
      %661 = vrot.lane.b32.xlu0 %v658, 127
      %v662 = vpop.permute.xlu0 %661
      %663 = vrot.lane.b32.xlu0 %v659, 127
      %v664 = vpop.permute.xlu0 %663
      %665 = vrot.lane.b32.xlu0 %v660, 127
      %v666 = vpop.permute.xlu0 %665
      %v667 = vsel %vm459, %v662, %v664
      %v668 = vsel %vm459, %v664, %v666
      %672 = vst [vmem:[#allocation4 + $0x48] sm:$0xc0] %v667
      %673 = vst [vmem:[#allocation4 + $0x50] sm:$0xc0] %v668
      %674 = vst.msk [vmem:[#allocation4 + $0x58] sm:$0xc0] %vm491, %v666
      %675 = vst [vmem:[#allocation4 + $0x60] sm:$0x1] %v667
      %676 = vst [vmem:[#allocation4 + $0x68] sm:$0x1] %v668
      %677 = vst.msk [vmem:[#allocation4 + $0x70] sm:$0x1] %vm495, %v666
      %v678 = vld [vmem:[#allocation3] sm:$0x77]
      %v679 = vld [vmem:[#allocation3 + $0x8] sm:$0x7]
      %v682 = vcombine.high %v678, %v678
      %v683 = vrot.slane %v678, 7
      %v684 = vrot.slane %v682, 7
      %v685 = vrot.slane %v679, 7
      %686 = vrot.lane.b32.xlu0 %v683, 126
      %v687 = vpop.permute.xlu0 %686
      %688 = vrot.lane.b32.xlu0 %v684, 126
      %v689 = vpop.permute.xlu0 %688
      %690 = vrot.lane.b32.xlu0 %v685, 126
      %v691 = vpop.permute.xlu0 %690
      %v692 = vsel %vm483, %v687, %v689
      %v693 = vsel %vm483, %v689, %v691
      %697 = vst [vmem:[#allocation4 + $0x60] sm:$0xe] %v692
      %698 = vst [vmem:[#allocation4 + $0x68] sm:$0xe] %v693
      %699 = vst.msk [vmem:[#allocation4 + $0x70] sm:$0xe] %vm519, %v691
      %v700 = vld [vmem:[#allocation3] sm:$0x77]
      %v701 = vld [vmem:[#allocation3 + $0x8] sm:$0x7]
      %v704 = vcombine.low %v700, %v700
      %v705 = vcombine.low %v701, %v701
      %706 = vrot.lane.b32.xlu0 %v704, 110
      %v707 = vpop.permute.xlu0 %706
      %708 = vrot.lane.b32.xlu0 %v700, 110
      %v709 = vpop.permute.xlu0 %708
      %710 = vrot.lane.b32.xlu0 %v705, 110
      %v711 = vpop.permute.xlu0 %710
      %v712 = vsel %vm511, %v707, %v709
      %v713 = vsel %vm511, %v709, %v711
      %717 = vst [vmem:[#allocation4 + $0x60] sm:$0x70] %v712
      %718 = vst [vmem:[#allocation4 + $0x68] sm:$0x70] %v713
      %719 = vst.msk [vmem:[#allocation4 + $0x70] sm:$0x70] %vm541, %v711
      %v720 = vld [vmem:[#allocation3] sm:$0x77]
      %v721 = vld [vmem:[#allocation3 + $0x8] sm:$0x7]
      %v724 = vcombine.high %v720, %v720
      %v725 = vrot.slane %v720, 1
      %v726 = vrot.slane %v724, 1
      %v727 = vrot.slane %v721, 1
      %728 = vrot.lane.b32.xlu0 %v725, 109
      %v729 = vpop.permute.xlu0 %728
      %730 = vrot.lane.b32.xlu0 %v726, 109
      %v731 = vpop.permute.xlu0 %730
      %732 = vrot.lane.b32.xlu0 %v727, 109
      %v733 = vpop.permute.xlu0 %732
      %v734 = vsel %vm533, %v729, %v731
      %v735 = vsel %vm533, %v731, %v733
      %739 = vst [vmem:[#allocation4 + $0x60] sm:$0x80] %v734
      %740 = vst [vmem:[#allocation4 + $0x68] sm:$0x80] %v735
      %741 = vst.msk [vmem:[#allocation4 + $0x70] sm:$0x80] %vm565, %v733
      %742 = vst [vmem:[#allocation4 + $0x78] sm:$0x3] %v734
      %743 = vst [vmem:[#allocation4 + $0x80] sm:$0x3] %v735
      %744 = vst.msk [vmem:[#allocation4 + $0x88] sm:$0x3] %vm569, %v733
      %v745 = vld [vmem:[#allocation3] sm:$0x77]
      %v746 = vld [vmem:[#allocation3 + $0x8] sm:$0x7]
      %v749 = vcombine.high %v745, %v745
      %v750 = vrot.slane %v745, 6
      %v751 = vrot.slane %v749, 6
      %v752 = vrot.slane %v746, 6
      %753 = vrot.lane.b32.xlu0 %v750, 108
      %v754 = vpop.permute.xlu0 %753
      %755 = vrot.lane.b32.xlu0 %v751, 108
      %v756 = vpop.permute.xlu0 %755
      %757 = vrot.lane.b32.xlu0 %v752, 108
      %v758 = vpop.permute.xlu0 %757
      %v759 = vsel %vm557, %v754, %v756
      %v760 = vsel %vm557, %v756, %v758
      %764 = vst [vmem:[#allocation4 + $0x78] sm:$0x1c] %v759
      %765 = vst [vmem:[#allocation4 + $0x80] sm:$0x1c] %v760
      %766 = vst.msk [vmem:[#allocation4 + $0x88] sm:$0x1c] %vm593, %v758
      %v767 = vld [vmem:[#allocation3] sm:$0x77]
      %v768 = vld [vmem:[#allocation3 + $0x8] sm:$0x7]
      %v771 = vcombine.high %v767, %v767
      %v772 = vrot.slane %v767, 3
      %v773 = vrot.slane %v771, 3
      %v774 = vrot.slane %v768, 3
      %775 = vrot.lane.b32.xlu0 %v772, 92
      %v776 = vpop.permute.xlu0 %775
      %777 = vrot.lane.b32.xlu0 %v773, 92
      %v778 = vpop.permute.xlu0 %777
      %779 = vrot.lane.b32.xlu0 %v774, 92
      %v780 = vpop.permute.xlu0 %779
      %v781 = vsel %vm585, %v776, %v778
      %v782 = vsel %vm585, %v778, %v780
      %786 = vst [vmem:[#allocation4 + $0x78] sm:$0xe0] %v781
      %787 = vst [vmem:[#allocation4 + $0x80] sm:$0xe0] %v782
      %788 = vst.msk [vmem:[#allocation4 + $0x88] sm:$0xe0] %vm617, %v780
      %v789 = vld [vmem:[#allocation3] sm:$0x77]
      %v790 = vld [vmem:[#allocation3 + $0x8] sm:$0x7]
      %v793 = vcombine.high %v789, %v789
      %794 = vrot.lane.b32.xlu0 %v789, 91
      %v795 = vpop.permute.xlu0 %794
      %796 = vrot.lane.b32.xlu0 %v793, 91
      %v797 = vpop.permute.xlu0 %796
      %798 = vrot.lane.b32.xlu0 %v790, 91
      %v799 = vpop.permute.xlu0 %798
      %v800 = vsel %vm609, %v795, %v797
      %v801 = vsel %vm609, %v797, %v799
      %805 = vst [vmem:[#allocation4 + $0x90] sm:$0x7] %v800
      %806 = vst [vmem:[#allocation4 + $0x98] sm:$0x7] %v801
      %807 = vst.msk [vmem:[#allocation4 + $0xa0] sm:$0x7] %vm443, %v799
      %v808 = vld [vmem:[#allocation3] sm:$0x77]
      %v809 = vld [vmem:[#allocation3 + $0x8] sm:$0x7]
      %v812 = vcombine.high %v808, %v808
      %v813 = vrot.slane %v808, 5
      %v814 = vrot.slane %v812, 5
      %v815 = vrot.slane %v809, 5
      %816 = vrot.lane.b32.xlu0 %v813, 90
      %v817 = vpop.permute.xlu0 %816
      %818 = vrot.lane.b32.xlu0 %v814, 90
      %v819 = vpop.permute.xlu0 %818
      %820 = vrot.lane.b32.xlu0 %v815, 90
      %v821 = vpop.permute.xlu0 %820
      %v822 = vsel %vm630, %v817, %v819
      %v823 = vsel %vm630, %v819, %v821
      %827 = vst [vmem:[#allocation4 + $0x90] sm:$0x38] %v822
      %828 = vst [vmem:[#allocation4 + $0x98] sm:$0x38] %v823
      %829 = vst.msk [vmem:[#allocation4 + $0xa0] sm:$0x38] %vm467, %v821
      %v830 = vld [vmem:[%s2] sm:$0xff]
      %v831 = vld [vmem:[#allocation4] sm:$0xff]
      %v832 = vld [vmem:[#allocation4 + $0x8] sm:$0xff]
      %v833 = vld [vmem:[#allocation4 + $0x10] sm:$0xff]
      %v834 = vld [vmem:[#allocation4 + $0x18] sm:$0xff]
      %v835 = vld [vmem:[#allocation4 + $0x20] sm:$0xff]
      %v836 = vld [vmem:[#allocation4 + $0x28] sm:$0xff]
      %v837 = vld [vmem:[#allocation4 + $0x30] sm:$0xff]
      %v838 = vld [vmem:[#allocation4 + $0x38] sm:$0xff]
      %v839 = vld [vmem:[#allocation4 + $0x40] sm:$0xff]
      %v840 = vld [vmem:[#allocation4 + $0x48] sm:$0xff]
      %v841 = vld [vmem:[#allocation4 + $0x50] sm:$0xff]
      %v842 = vld [vmem:[#allocation4 + $0x58] sm:$0xff]
      %v843 = vld [vmem:[#allocation4 + $0x60] sm:$0xff]
      %v844 = vld [vmem:[#allocation4 + $0x68] sm:$0xff]
      %v845 = vld [vmem:[#allocation4 + $0x70] sm:$0xff]
      %v846 = vld [vmem:[#allocation4 + $0x78] sm:$0xff]
      %v847 = vld [vmem:[#allocation4 + $0x80] sm:$0xff]
      %v848 = vld [vmem:[#allocation4 + $0x88] sm:$0xff]
      %v849 = vld [vmem:[#allocation4 + $0x90] sm:$0x3f]
      %v850 = vld [vmem:[#allocation4 + $0x98] sm:$0x3f]
      %v851 = vld [vmem:[#allocation4 + $0xa0] sm:$0x3f]
      %v852 = vld [vmem:[%s3] sm:$0xff]
      %854 = vset.pattern.permute.xlu0 0
      %855 = vperm.xlu0 %854, %v852
      %v856 = vpop.permute.xlu0 %855
      %vm858 = vcmask 441344
      %v860 = vsel %vm858, %v830, 0
      %vm862 = vcmask 1045504
      %v864 = vsel %vm862, %v849, 0
      %v867 = vsel %vm862, %v850, 0
      %v870 = vsel %vm862, %v851, 0
      %872 = vmatprep.subr.mxu0 %v832
      %873 = vmatpush1.msra.mxu0 %v831
      %874 = vmatprep.subr.mxu0 %v835
      %875 = vmatpush1.msra.mxu0 %v834
      %876 = vmatprep.subr.mxu0 %v838
      %877 = vmatpush1.msra.mxu0 %v837
      %878 = vmatprep.subr.mxu0 %v841
      %879 = vmatpush1.msra.mxu0 %v840
      %880 = vmatprep.subr.mxu0 %v844
      %881 = vmatpush1.msra.mxu0 %v843
      %882 = vmatprep.subr.mxu0 %v847
      %883 = vmatpush1.msra.mxu0 %v846
      %884 = vmatprep.subr.mxu0 %v867
      %885 = vmatpush1.msra.mxu0 %v864
      %886 = vmatprep.subr.mxu0 0.0
      %887 = vmatpush1.msra.mxu0 0.0
      %888 = vmatprep.subr.mxu0 0.0
      %889 = vmatpush1.msra.mxu0 0.0
      %890 = vmatprep.subr.mxu0 0.0
      %891 = vmatpush1.msra.mxu0 0.0
      %892 = vmatprep.subr.mxu0 0.0
      %893 = vmatpush1.msra.mxu0 0.0
      %894 = vmatprep.subr.mxu0 0.0
      %895 = vmatpush1.msra.mxu0 0.0
      %896 = vmatprep.subr.mxu0 0.0
      %897 = vmatpush1.msra.mxu0 0.0
      %898 = vmatprep.subr.mxu0 0.0
      %899 = vmatpush1.msra.mxu0 0.0
      %900 = vmatprep.subr.mxu0 0.0
      %901 = vmatpush1.msra.mxu0 0.0
      %902 = vmatprep.subr.mxu0 0.0
      %903 = vmatpush1.msra.mxu0 0.0
      %904 = vmatprep.subr.mxu0 0.0
      %905 = vmatpush1.msra.mxu0 0.0
      %906 = vmatprep.subr.mxu0 0.0
      %907 = vmatpush1.msra.mxu0 0.0
      %908 = vmatprep.subr.mxu0 0.0
      %909 = vmatpush1.msra.mxu0 0.0
      %910 = vmatprep.subr.mxu0 0.0
      %911 = vmatpush1.msra.mxu0 0.0
      %912 = vmatprep.subr.mxu0 0.0
      %913 = vmatpush1.msra.mxu0 0.0
      %914 = vmatprep.subr.mxu0 0.0
      %915 = vmatpush1.msra.mxu0 0.0
      %916 = vmatprep.subr.mxu0 0.0
      %917 = vmatpush1.msra.mxu0 0.0
      %918 = vmatprep.subr.mxu0 0.0
      %919 = vmatpush1.msra.mxu0 0.0
      %920 = vmatprep.subr.mxu0 0.0
      %921 = vmatpush1.msra.mxu0 0.0
      %922 = vmatprep.subr.mxu0 0.0
      %923 = vmatpush1.msra.mxu0 0.0
      %924 = vmatprep.subr.mxu0 0.0
      %925 = vmatpush1.msra.mxu0 0.0
      %926 = vmatprep.subr.mxu0 0.0
      %927 = vmatpush1.msra.mxu0 0.0
      %928 = vmatprep.subr.mxu0 0.0
      %929 = vmatpush1.msra.mxu0 0.0
      %930 = vmatprep.subr.mxu0 0.0
      %931 = vmatpush1.msra.mxu0 0.0
      %932 = vmatprep.subr.mxu0 0.0
      %933 = vmatpush1.msra.mxu0 0.0
      %934 = vmatprep.subr.mxu0 0.0
      %935 = vmatpush1.msra.mxu0 0.0
      %936 = vmatprep.mubr.f32.mxu0 0.0
      %937 = vmatmul.mubr.f32.gmra.mrb[0].mxu0 %v860
      %v938 = vpop.f32.mrb[0].mxu0
      %v939 = vadd.f32 %v856, %v938
      %v940 = vpop.f32.mrb[0].mxu0
      %v941 = vadd.f32 %v856, %v940
      %942 = vdwg.mxu0
      %943 = vmatprep.subr.mxu0 0.0
      %944 = vmatpush1.msra.mxu0 %v833
      %945 = vmatprep.subr.mxu0 0.0
      %946 = vmatpush1.msra.mxu0 %v836
      %947 = vmatprep.subr.mxu0 0.0
      %948 = vmatpush1.msra.mxu0 %v839
      %949 = vmatprep.subr.mxu0 0.0
      %950 = vmatpush1.msra.mxu0 %v842
      %951 = vmatprep.subr.mxu0 0.0
      %952 = vmatpush1.msra.mxu0 %v845
      %953 = vmatprep.subr.mxu0 0.0
      %954 = vmatpush1.msra.mxu0 %v848
      %955 = vmatprep.subr.mxu0 0.0
      %956 = vmatpush1.msra.mxu0 %v870
      %957 = vmatprep.subr.mxu0 0.0
      %958 = vmatpush1.msra.mxu0 0.0
      %959 = vmatprep.subr.mxu0 0.0
      %960 = vmatpush1.msra.mxu0 0.0
      %961 = vmatprep.subr.mxu0 0.0
      %962 = vmatpush1.msra.mxu0 0.0
      %963 = vmatprep.subr.mxu0 0.0
      %964 = vmatpush1.msra.mxu0 0.0
      %965 = vmatprep.subr.mxu0 0.0
      %966 = vmatpush1.msra.mxu0 0.0
      %967 = vmatprep.subr.mxu0 0.0
      %968 = vmatpush1.msra.mxu0 0.0
      %969 = vmatprep.subr.mxu0 0.0
      %970 = vmatpush1.msra.mxu0 0.0
      %971 = vmatprep.subr.mxu0 0.0
      %972 = vmatpush1.msra.mxu0 0.0
      %973 = vmatprep.subr.mxu0 0.0
      %974 = vmatpush1.msra.mxu0 0.0
      %975 = vmatprep.subr.mxu0 0.0
      %976 = vmatpush1.msra.mxu0 0.0
      %977 = vmatprep.subr.mxu0 0.0
      %978 = vmatpush1.msra.mxu0 0.0
      %979 = vmatprep.subr.mxu0 0.0
      %980 = vmatpush1.msra.mxu0 0.0
      %981 = vmatprep.subr.mxu0 0.0
      %982 = vmatpush1.msra.mxu0 0.0
      %983 = vmatprep.subr.mxu0 0.0
      %984 = vmatpush1.msra.mxu0 0.0
      %985 = vmatprep.subr.mxu0 0.0
      %986 = vmatpush1.msra.mxu0 0.0
      %987 = vmatprep.subr.mxu0 0.0
      %988 = vmatpush1.msra.mxu0 0.0
      %989 = vmatprep.subr.mxu0 0.0
      %990 = vmatpush1.msra.mxu0 0.0
      %991 = vmatprep.subr.mxu0 0.0
      %992 = vmatpush1.msra.mxu0 0.0
      %993 = vmatprep.subr.mxu0 0.0
      %994 = vmatpush1.msra.mxu0 0.0
      %995 = vmatprep.subr.mxu0 0.0
      %996 = vmatpush1.msra.mxu0 0.0
      %997 = vmatprep.subr.mxu0 0.0
      %998 = vmatpush1.msra.mxu0 0.0
      %999 = vmatprep.subr.mxu0 0.0
      %1000 = vmatpush1.msra.mxu0 0.0
      %1001 = vmatprep.subr.mxu0 0.0
      %1002 = vmatpush1.msra.mxu0 0.0
      %1003 = vmatprep.subr.mxu0 0.0
      %1004 = vmatpush1.msra.mxu0 0.0
      %1005 = vmatprep.subr.mxu0 0.0
      %1006 = vmatpush1.msra.mxu0 0.0
      %1007 = vmatprep.mubr.f32.mxu0 0.0
      %1008 = vmatmul.mubr.f32.gmra.mrb[0].mxu0 %v860
      %v1009 = vpop.f32.mrb[0].mxu0
      %v1010 = vadd.f32 %v856, %v1009
      %v1011 = vpop.f32.mrb[0].mxu0
      %1012 = vdwg.mxu0
      %v1013 = vxor.u32 %v939, 2147483648
      %v1014 = vxor.u32 %v941, 2147483648
      %v1015 = vxor.u32 %v1010, 2147483648
      %v1016 = vmul.f32 %v1013, 1.442695
      %v1017 = vpow.pop %v1016
      %v1018 = vmul.f32 %v1014, 1.442695
      %v1019 = vpow.pop %v1018
      %v1020 = vmul.f32 %v1015, 1.442695
      %v1021 = vpow.pop %v1020
      %v1022 = vadd.f32 %v1017, 1.0
      %v1023 = vadd.f32 %v1019, 1.0
      %v1024 = vadd.f32 %v1021, 1.0
      %v1025 = vrcp.pop %v1022
      %v1026 = vmul.f32 1.0, %v1025
      %v1027 = vrcp.pop %v1023
      %v1028 = vmul.f32 1.0, %v1027
      %v1029 = vrcp.pop %v1024
      %v1030 = vmul.f32 1.0, %v1029
      %vm1031 = vcmask 130048
      %1032 = vst.msk [vmem:[%s217] sm:$0xff] %vm1031, %v1026
      %1034 = vrot.lane.b32.xlu0 %v1026, 126
      %v1035 = vpop.permute.xlu0 %1034
      %vm1037 = vcmask 261248
      %1038 = vst.msk [vmem:[%s217] sm:$0xff] %vm1037, %v1035
      %1039 = vrot.lane.b32.xlu0 %v1026, 124
      %v1040 = vpop.permute.xlu0 %1039
      %vm1042 = vcmask 392448
      %1043 = vst.msk [vmem:[%s217] sm:$0xff] %vm1042, %v1040
      %1044 = vrot.lane.b32.xlu0 %v1026, 122
      %v1045 = vpop.permute.xlu0 %1044
      %vm1047 = vcmask 523648
      %1048 = vst.msk [vmem:[%s217] sm:$0xff] %vm1047, %v1045
      %1049 = vrot.lane.b32.xlu0 %v1026, 120
      %v1050 = vpop.permute.xlu0 %1049
      %vm1052 = vcmask 654848
      %1053 = vst.msk [vmem:[%s217] sm:$0xff] %vm1052, %v1050
      %1054 = vrot.lane.b32.xlu0 %v1026, 118
      %v1055 = vpop.permute.xlu0 %1054
      %vm1057 = vcmask 786048
      %1058 = vst.msk [vmem:[%s217] sm:$0xff] %vm1057, %v1055
      %1059 = vrot.lane.b32.xlu0 %v1026, 116
      %v1060 = vpop.permute.xlu0 %1059
      %vm1062 = vcmask 917248
      %1063 = vst.msk [vmem:[%s217] sm:$0xff] %vm1062, %v1060
      %1065 = vrot.lane.b32.xlu0 %v1026, 114
      %v1066 = vpop.permute.xlu0 %1065
      %1067 = vrot.lane.b32.xlu0 %v1028, 114
      %v1068 = vpop.permute.xlu0 %1067
      %vm1069 = vcmask 932864
      %v1070 = vsel %vm1069, %v1066, %v1068
      %vm1072 = vcmask 1048448
      %1073 = vst.msk [vmem:[%s217] sm:$0xff] %vm1072, %v1070
      %1074 = vrot.lane.b32.xlu0 %v1028, 112
      %v1075 = vpop.permute.xlu0 %1074
      %1077 = vst.msk [vmem:[%s217 + $0x8] sm:$0xff] %vm1031, %v1075
      %1078 = vrot.lane.b32.xlu0 %v1028, 110
      %v1079 = vpop.permute.xlu0 %1078
      %1081 = vst.msk [vmem:[%s217 + $0x8] sm:$0xff] %vm1037, %v1079
      %1082 = vrot.lane.b32.xlu0 %v1028, 108
      %v1083 = vpop.permute.xlu0 %1082
      %1085 = vst.msk [vmem:[%s217 + $0x8] sm:$0xff] %vm1042, %v1083
      %1086 = vrot.lane.b32.xlu0 %v1028, 106
      %v1087 = vpop.permute.xlu0 %1086
      %1089 = vst.msk [vmem:[%s217 + $0x8] sm:$0xff] %vm1047, %v1087
      %1090 = vrot.lane.b32.xlu0 %v1028, 104
      %v1091 = vpop.permute.xlu0 %1090
      %1093 = vst.msk [vmem:[%s217 + $0x8] sm:$0xff] %vm1052, %v1091
      %1094 = vrot.lane.b32.xlu0 %v1028, 102
      %v1095 = vpop.permute.xlu0 %1094
      %1097 = vst.msk [vmem:[%s217 + $0x8] sm:$0xff] %vm1057, %v1095
      %1099 = vrot.lane.b32.xlu0 %v1028, 100
      %v1100 = vpop.permute.xlu0 %1099
      %1101 = vrot.lane.b32.xlu0 %v1030, 100
      %v1102 = vpop.permute.xlu0 %1101
      %vm1103 = vcmask 818176
      %v1104 = vsel %vm1103, %v1100, %v1102
      %1106 = vst.msk [vmem:[%s217 + $0x8] sm:$0xff] %vm1062, %v1104
      %1107 = vrot.lane.b32.xlu0 %v1030, 98
      %v1108 = vpop.permute.xlu0 %1107
      %1110 = vst.msk [vmem:[%s217 + $0x8] sm:$0xff] %vm1072, %v1108
      %p1111 = scmp.lt.s32.totalorder %s15, 1
      %s1112 = scalar_select %p1111, %s15, 1
      %s1113 = smul.addr %s1112, 2
      %s1114 = smul.addr %s1113, 8
      %s1115 = scalar_lea.vmem %s4, %s1114
      // Predicated region
      $region37: #{model_forward.1} parent=35 // pred_check
        %p1116 = pneg %p127
      $region38: #{model_forward.1} parent=35 // pred_check_branch
        %1118 = sbr.rel (%p1116) target = $region40
      $region39: #{model_forward.1} parent=35 // pred_region
        _
      $region40: #{model_forward.1} parent=35 // pred_fallthru
        _
    $region36: #{model_forward.1} parent=5 // pred_fallthru
      _
    %p1119 = scmp.le.s32.totalorder 2, %s10
    // Predicated region
    $region41: #{model_forward.1} parent=5 // pred_check
      %p1120 = pneg %p1119
    $region42: #{model_forward.1} parent=5 // pred_check_branch
      %1122 = sbr.rel (%p1120) target = $region44
    $region43: #{model_forward.1} parent=5 // pred_region
      %s1123 = ssub.s32 %s10, 2
      // Predicated region
      $region45: #{model_forward.1} parent=43 // pred_check
        %p1124 = pneg %p133
      $region46: #{model_forward.1} parent=43 // pred_check_branch
        %1126 = sbr.rel (%p1124) target = $region48
      $region47: #{model_forward.1} parent=43 // pred_region
        %p1127 = scmp.lt.s32.totalorder %s16, 1
        %s1128 = scalar_select %p1127, %s16, 1
        %s1129 = smul.addr %s1128, 2
        %s1130 = smul.addr %s1129, 8
        %s1131 = scalar_lea.vmem %s4, %s1130
      $region48: #{model_forward.1} parent=43 // pred_fallthru
        _
    $region44: #{model_forward.1} parent=5 // pred_fallthru
      _
  $region6: #{model_forward.1} parent=0 // loop_footer
    %s14 = sadd.s32 1, %s10
  $region7: #{model_forward.1} parent=0 // loop_footer_branch
    %9 = sbr.rel target = $region3
  $region8: #{model_forward.1} parent=0 // loop_exit
    _

</llo_original>
